<compile_context>
chip_gen: v6e
topology: v6e:2x2x1
jax: 0.10.0
libtpu: 0.0.40
codegen_flags: <defaults>
</compile_context>

<pallas_src>
import jax
import jax.numpy as jnp
from jax.experimental import pallas as pl
from jax.experimental.pallas import tpu as pltpu


# -----------------------------------------------------------------------------
# Helpers
# -----------------------------------------------------------------------------
def _round_up(v, m):
    return ((v + m - 1) // m) * m


def _vmem_capacity():
    try:
        info = pltpu.get_tpu_info()
        cap = getattr(info, "vmem_capacity_bytes", None)
        if cap:
            return int(cap)
    except Exception:
        pass
    return 64 * 1024 * 1024  # conservative fallback (v7x physical VMEM)


def _vmem_limit(need_bytes, budget):
    # Request enough scoped VMEM for our buffers (with slack), never more than
    # 75% of physical capacity (headroom for compiler scratch / 2nd core).
    return int(min(max(2 * need_bytes, 32 * 1024 * 1024), budget))


def _fused_need_bytes(n, f_in, h, f_out):
    # Rough VMEM footprint of the fused whole-graph kernel (per grid step).
    return (2 * n * n * 4            # f32 A block, double-buffered
            + n * n * 2              # in-kernel bf16 copy of A
            + 2 * n * f_in * 4       # x block, double-buffered
            + 2 * n * f_out * 4      # output block, double-buffered
            + 6 * n * max(h, f_out, 128) * 4   # intermediates (xw1/h1/xw2 + casts)
            + (4 << 20))             # slack


# -----------------------------------------------------------------------------
# Fused whole-graph kernel (small/medium N): both layers, A read once.
# Grid: (graph,) -- "parallel" (feeds both v7x TensorCores when B >= 2).
# -----------------------------------------------------------------------------
def _fused_kernel(adj_ref, x_ref, w1_ref, b1_ref, w2_ref, b2_ref, o_ref):
    a = adj_ref[0].astype(jnp.bfloat16)                       # cast in-kernel (VPU)
    xw1 = jnp.dot(x_ref[0].astype(jnp.bfloat16), w1_ref[...],
                  preferred_element_type=jnp.float32)
    h1 = jnp.maximum(
        jnp.dot(a, xw1.astype(jnp.bfloat16), preferred_element_type=jnp.float32)
        + b1_ref[...], 0.0)
    xw2 = jnp.dot(h1.astype(jnp.bfloat16), w2_ref[...],
                  preferred_element_type=jnp.float32)
    o_ref[0] = (jnp.maximum(
        jnp.dot(a, xw2.astype(jnp.bfloat16), preferred_element_type=jnp.float32)
        + b2_ref[...], 0.0)).astype(o_ref.dtype)


def _fused_forward(adj, x, w1, b1, w2, b2, *, budget):
    b, n, _ = adj.shape
    f_in, h, f_out = x.shape[-1], w1.shape[1], w2.shape[1]
    need = _fused_need_bytes(n, f_in, h, f_out)
    return pl.pallas_call(
        _fused_kernel,
        out_shape=jax.ShapeDtypeStruct((b, n, f_out), jnp.float32),
        grid_spec=pltpu.PrefetchScalarGridSpec(
            num_scalar_prefetch=0,
            grid=(b,),
            in_specs=[
                pl.BlockSpec((1, n, n), lambda g: (g, 0, 0)),
                pl.BlockSpec((1, n, f_in), lambda g: (g, 0, 0)),
                pl.BlockSpec((f_in, h), lambda g: (0, 0)),
                pl.BlockSpec((1, h), lambda g: (0, 0)),
                pl.BlockSpec((h, f_out), lambda g: (0, 0)),
                pl.BlockSpec((1, f_out), lambda g: (0, 0)),
            ],
            out_specs=pl.BlockSpec((1, n, f_out), lambda g: (g, 0, 0)),
        ),
        compiler_params=pltpu.CompilerParams(
            dimension_semantics=("parallel",),
            vmem_limit_bytes=_vmem_limit(need, budget),
        ),
    )(adj.astype(jnp.float32), x.astype(jnp.float32),
      w1.astype(jnp.bfloat16), b1.reshape(1, -1).astype(jnp.float32),
      w2.astype(jnp.bfloat16), b2.reshape(1, -1).astype(jnp.float32))


# -----------------------------------------------------------------------------
# Streaming aggregation kernels (large N).
# Grid: (graph, row-tile i, reduction-tile k) -- reduction last, "arbitrary".
# -----------------------------------------------------------------------------
def _make_agg_fused_w2_kernel(tk, xw_resident):
    """o_bf16 = ReLU(A @ XW + b) @ W2  (layer-1 aggregation + fused layer-2 XW)."""
    def kernel(adj_ref, xw_ref, b_ref, w2_ref, o_ref, acc_ref):
        k = pl.program_id(2)

        @pl.when(k == 0)
        def _():
            acc_ref[...] = jnp.zeros_like(acc_ref)

        if xw_resident:
            start = pl.multiple_of(k * tk, tk)
            xw = xw_ref[pl.ds(start, tk), :]
        else:
            xw = xw_ref[0]
        acc_ref[...] += jnp.dot(adj_ref[0].astype(jnp.bfloat16), xw,
                                preferred_element_type=jnp.float32)

        @pl.when(k == pl.num_programs(2) - 1)
        def _():
            hidden = jnp.maximum(acc_ref[...] + b_ref[...], 0.0).astype(jnp.bfloat16)
            o_ref[0] = jnp.dot(hidden, w2_ref[...],
                               preferred_element_type=jnp.float32).astype(o_ref.dtype)
    return kernel


def _make_agg_kernel(tk, xw_resident):
    """o_f32 = ReLU(A @ XW + b); accumulates directly in the resident output."""
    def kernel(adj_ref, xw_ref, b_ref, o_ref):
        k = pl.program_id(2)

        @pl.when(k == 0)
        def _():
            o_ref[...] = jnp.zeros_like(o_ref)

        if xw_resident:
            start = pl.multiple_of(k * tk, tk)
            xw = xw_ref[pl.ds(start, tk), :]
        else:
            xw = xw_ref[0]
        o_ref[0] += jnp.dot(adj_ref[0].astype(jnp.bfloat16), xw,
                            preferred_element_type=jnp.float32)

        @pl.when(k == pl.num_programs(2) - 1)
        def _():
            o_ref[0] = jnp.maximum(o_ref[0] + b_ref[...], 0.0)
    return kernel


def _aggregate(adj, xw, bias, w2, *, tm, out_dtype, budget):
    """ReLU(adj @ xw + bias), optionally right-multiplied by w2 in the epilogue."""
    b, np_, _ = adj.shape
    feat = xw.shape[-1]
    out_feat = w2.shape[-1] if w2 is not None else feat
    tk = tm

    # Keep XW resident across the whole reduction (fetched once per graph)
    # unless its double-buffered footprint exceeds ~25% of the VMEM budget.
    xw_full_bytes = np_ * feat * 2
    xw_resident = (2 * xw_full_bytes) <= budget // 4
    xw_buf_bytes = xw_full_bytes if xw_resident else tk * feat * 2

    out_isz = jnp.dtype(out_dtype).itemsize
    need = (2 * tm * tk * adj.dtype.itemsize          # A tile (double-buffered)
            + 2 * xw_buf_bytes                        # XW buffers
            + 2 * tm * out_feat * out_isz             # output tile
            + (tm * feat * 4 if w2 is not None else 0)   # f32 accumulator scratch
            + feat * 4                                # bias
            + (feat * out_feat * 2 if w2 is not None else 0)  # resident W2
            + (4 << 20))                              # slack

    if xw_resident:
        xw_spec = pl.BlockSpec((None, np_, feat), lambda g, i, k: (g, 0, 0))
    else:
        xw_spec = pl.BlockSpec((1, tk, feat), lambda g, i, k: (g, k, 0))

    in_specs = [
        pl.BlockSpec((1, tm, tk), lambda g, i, k: (g, i, k)),
        xw_spec,
        pl.BlockSpec((1, feat), lambda g, i, k: (0, 0)),
    ]
    operands = [adj, xw, bias]
    if w2 is not None:
        kernel = _make_agg_fused_w2_kernel(tk, xw_resident)
        in_specs.append(pl.BlockSpec((feat, out_feat), lambda g, i, k: (0, 0)))
        operands.append(w2)
        scratch = [pltpu.VMEM((tm, feat), jnp.float32)]
    else:
        kernel = _make_agg_kernel(tk, xw_resident)
        scratch = []

    return pl.pallas_call(
        kernel,
        out_shape=jax.ShapeDtypeStruct((b, np_, out_feat), out_dtype),
        grid_spec=pltpu.PrefetchScalarGridSpec(
            num_scalar_prefetch=0,
            grid=(b, np_ // tm, np_ // tk),
            in_specs=in_specs,
            out_specs=pl.BlockSpec((1, tm, out_feat), lambda g, i, k: (g, i, 0)),
            scratch_shapes=scratch,
        ),
        compiler_params=pltpu.CompilerParams(
            dimension_semantics=("parallel", "parallel", "arbitrary"),
            vmem_limit_bytes=_vmem_limit(need, budget),
        ),
    )(*operands)


def _streaming_forward(adj, x, w1, b1, w2, b2, *, budget):
    b, n, _ = adj.shape
    f_in, h, f_out = x.shape[-1], w1.shape[1], w2.shape[1]
    hp = _round_up(h, 128)
    op = _round_up(f_out, 128)

    # Node tiling: multiples of 256 for the v6e/v7x 2x256x256 MXU, up to 512
    # for HBM-roofline efficiency.  Avoid padding the N^2 adjacency when N is
    # already tile-aligned (padding costs a full extra HBM pass over A).
    if n % 512 == 0:
        tm, npad = 512, n
    elif n % 256 == 0:
        tm, npad = 256, n
    else:
        tm = 512 if n >= 512 else 256
        npad = _round_up(n, tm)

    # v7x megacore: keep >= 2 blocks along the parallel grid axes per call.
    while b * (npad // tm) < 2 and tm > 128:
        tm //= 2

    if npad == n:
        adj_p = adj                       # stays f32 in HBM; cast tile-wise in-kernel
    else:
        # pad + bf16-cast fuse into a single XLA pass; zero-padding is exact
        # (padded A rows/cols are zero, padded outputs are sliced off below).
        adj_p = jnp.pad(adj, ((0, 0), (0, npad - n), (0, npad - n))).astype(jnp.bfloat16)

    b1_p = jnp.pad(b1.reshape(1, -1), ((0, 0), (0, hp - h))).astype(jnp.float32)
    w2_p = jnp.pad(w2, ((0, hp - h), (0, op - f_out))).astype(jnp.bfloat16)
    b2_p = jnp.pad(b2.reshape(1, -1), ((0, 0), (0, op - f_out))).astype(jnp.float32)

    # Layer-1 feature matmul: tiny GEMM, hoisted once; leave it to XLA.
    xw1 = jnp.einsum("bnf,fh->bnh", x.astype(jnp.bfloat16), w1.astype(jnp.bfloat16),
                     preferred_element_type=jnp.float32)
    xw1 = jnp.pad(xw1, ((0, 0), (0, npad - n), (0, hp - h))).astype(jnp.bfloat16)

    # Layer 1 aggregation with layer-2's feature matmul fused into the epilogue:
    #   xw2 = ReLU(A @ xw1 + b1) @ W2     (h1 never round-trips HBM)
    xw2 = _aggregate(adj_p, xw1, b1_p, w2_p, tm=tm, out_dtype=jnp.bfloat16,
                     budget=budget)
    # Layer 2 aggregation: y = ReLU(A @ xw2 + b2), accumulated in the f32 output.
    y = _aggregate(adj_p, xw2, b2_p, None, tm=tm, out_dtype=jnp.float32,
                   budget=budget)
    return y[:, :n, :f_out]


# -----------------------------------------------------------------------------
# Combined forward:  y = ReLU(A @ (ReLU(A @ (x@W1) + b1) @ W2) + b2)
# -----------------------------------------------------------------------------
def combine_flexible_gnn(adj, x, w1, b1, w2, b2, *, mode="auto"):
    """Two-layer flexible-GNN forward.

    adj: [B, N, N] or [N, N];  x: [B, N, F_in] (or [N, F_in]);
    w1: [F_in, H], b1: [1, H] or [H];  w2: [H, F_out], b2: [1, F_out] or [F_out].
    mode: "auto" | "fused" | "streaming".  Returns f32 [..., N, F_out].
    """
    squeeze = adj.ndim == 2
    if squeeze:
        adj, x = adj[None], x[None]
    b, n, _ = adj.shape
    f_in, h, f_out = x.shape[-1], w1.shape[1], w2.shape[1]

    budget = int(0.75 * _vmem_capacity())
    if mode == "auto":
        fits = _fused_need_bytes(n, f_in, h, f_out) <= budget // 2
        mode = "fused" if (fits and (b >= 2 or n < 512)) else "streaming"

    if mode == "fused":
        y = _fused_forward(adj, x, w1, b1, w2, b2, budget=budget)
    else:
        y = _streaming_forward(adj, x, w1, b1, w2, b2, budget=budget)
    return y[0] if squeeze else y


# -----------------------------------------------------------------------------
# Self-test
# -----------------------------------------------------------------------------
if __name__ == "__main__":
    def make_inputs(key, b, n, f_in, hid, f_out):
        k_x, k_a, k_w1, k_b1, k_w2, k_b2 = jax.random.split(key, 6)
        x = jax.random.normal(k_x, (b, n, f_in), dtype=jnp.float32)
        a_raw = (jax.random.uniform(k_a, (b, n, n)) > 0.9).astype(jnp.float32)
        a_sym = jnp.maximum(a_raw, jnp.swapaxes(a_raw, -1, -2)) \
            + jnp.eye(n, dtype=jnp.float32)[None]
        adj = a_sym / jnp.sum(a_sym, axis=-1, keepdims=True)
        w1 = jax.random.normal(k_w1, (f_in, hid), dtype=jnp.float32) * 0.1
        b1 = jax.random.normal(k_b1, (1, hid), dtype=jnp.float32) * 0.1
        w2 = jax.random.normal(k_w2, (hid, f_out), dtype=jnp.float32) * 0.1
        b2 = jax.random.normal(k_b2, (1, f_out), dtype=jnp.float32) * 0.1
        return adj, x, w1, b1, w2, b2

    def reference(adj, x, w1, b1, w2, b2):
        h1 = jnp.maximum(adj @ (x @ w1) + b1, 0.0)
        return jnp.maximum(adj @ (h1 @ w2) + b2, 0.0)

    fwd = jax.jit(combine_flexible_gnn, static_argnames=("mode",))
    key0, key1 = jax.random.split(jax.random.PRNGKey(0))

    # 1) Small batch of graphs -> fused whole-graph path (auto-selected).
    args = make_inputs(key0, 2, 256, 32, 32, 32)
    ref = reference(*args)
    out = jax.block_until_ready(fwd(*args))
    assert out.shape == ref.shape
    err = float(jnp.max(jnp.abs(out - ref)))
    assert jnp.allclose(out, ref, atol=2e-2, rtol=2e-2), f"fused mismatch {err}"

    # 2) Same problem forced through the tiled streaming path
    #    (exercises resident XW + fused-W2 epilogue + accumulate-in-output).
    out_s = jax.block_until_ready(fwd(*args, mode="streaming"))
    err_s = float(jnp.max(jnp.abs(out_s - ref)))
    assert jnp.allclose(out_s, ref, atol=2e-2, rtol=2e-2), f"streaming mismatch {err_s}"

    # 3) Streaming path with node padding + tile halving (B=1, N not 256-aligned).
    args3 = make_inputs(key1, 1, 200, 16, 24, 8)
    ref3 = reference(*args3)
    out3 = jax.block_until_ready(fwd(*args3, mode="streaming"))
    err3 = float(jnp.max(jnp.abs(out3 - ref3)))
    assert jnp.allclose(out3, ref3, atol=2e-2, rtol=2e-2), f"padded mismatch {err3}"

    print("KERNEL_OK")
</pallas_src>

<mosaic_0001>
module attributes {stable_mosaic.version = 11 : i64} {
  func.func @_fused_kernel(%arg0: i32, %arg1: memref<1x256x256xf32, #tpu.memory_space<vmem>>, %arg2: memref<1x256x32xf32, #tpu.memory_space<vmem>>, %arg3: memref<32x32xbf16, #tpu.memory_space<vmem>>, %arg4: memref<1x32xf32, #tpu.memory_space<vmem>>, %arg5: memref<32x32xbf16, #tpu.memory_space<vmem>>, %arg6: memref<1x32xf32, #tpu.memory_space<vmem>>, %arg7: memref<1x256x32xf32, #tpu.memory_space<vmem>>) attributes {dimension_semantics = [#tpu.dimension_semantics<parallel>], iteration_bounds = array<i64: 2>, scalar_prefetch = 0 : i64, scratch_operands = 0 : i64, tpu.core_type = #tpu.core_type<tc>, window_params = [{transform_indices = @transform_0, window_bounds = array<i64: 1, 256, 256>}, {transform_indices = @transform_1, window_bounds = array<i64: 1, 256, 32>}, {pipeline_mode = #tpu.pipeline_mode<synchronous>, transform_indices = @transform_2, window_bounds = array<i64: 32, 32>}, {pipeline_mode = #tpu.pipeline_mode<synchronous>, transform_indices = @transform_3, window_bounds = array<i64: 1, 32>}, {pipeline_mode = #tpu.pipeline_mode<synchronous>, transform_indices = @transform_4, window_bounds = array<i64: 32, 32>}, {pipeline_mode = #tpu.pipeline_mode<synchronous>, transform_indices = @transform_5, window_bounds = array<i64: 1, 32>}, {transform_indices = @transform_6, window_bounds = array<i64: 1, 256, 32>}]} {
    %c0 = arith.constant 0 : index
    %c0_0 = arith.constant 0 : index
    %c0_1 = arith.constant 0 : index
    %0 = vector.load %arg1[%c0, %c0_0, %c0_1] : memref<1x256x256xf32, #tpu.memory_space<vmem>>, vector<1x256x256xf32>
    %1 = vector.shape_cast %0 : vector<1x256x256xf32> to vector<256x256xf32>
    %2 = arith.truncf %1 : vector<256x256xf32> to vector<256x256xbf16>
    %c0_2 = arith.constant 0 : index
    %c0_3 = arith.constant 0 : index
    %c0_4 = arith.constant 0 : index
    %3 = vector.load %arg2[%c0_2, %c0_3, %c0_4] : memref<1x256x32xf32, #tpu.memory_space<vmem>>, vector<1x256x32xf32>
    %4 = vector.shape_cast %3 : vector<1x256x32xf32> to vector<256x32xf32>
    %5 = arith.truncf %4 : vector<256x32xf32> to vector<256x32xbf16>
    %c0_5 = arith.constant 0 : index
    %c0_6 = arith.constant 0 : index
    %6 = vector.load %arg3[%c0_5, %c0_6] : memref<32x32xbf16, #tpu.memory_space<vmem>>, vector<32x32xbf16>
    %cst = arith.constant dense<0.000000e+00> : vector<256x32xf32>
    %7 = tpu.matmul %5, %6, %cst {dimension_numbers = #tpu.dot_dimension_numbers<[1], [0], [0], [1], [0, 0, 1, 1], [], []>} : vector<256x32xbf16>, vector<32x32xbf16>, vector<256x32xf32> -> vector<256x32xf32>
    %8 = arith.truncf %7 : vector<256x32xf32> to vector<256x32xbf16>
    %cst_7 = arith.constant dense<0.000000e+00> : vector<256x32xf32>
    %9 = tpu.matmul %2, %8, %cst_7 {dimension_numbers = #tpu.dot_dimension_numbers<[1], [0], [0], [1], [0, 0, 1, 1], [], []>} : vector<256x256xbf16>, vector<256x32xbf16>, vector<256x32xf32> -> vector<256x32xf32>
    %c0_8 = arith.constant 0 : index
    %c0_9 = arith.constant 0 : index
    %10 = vector.load %arg4[%c0_8, %c0_9] : memref<1x32xf32, #tpu.memory_space<vmem>>, vector<1x32xf32>
    %11 = vector.broadcast %10 : vector<1x32xf32> to vector<256x32xf32>
    %12 = arith.addf %9, %11 : vector<256x32xf32>
    %cst_10 = arith.constant 0.000000e+00 : f32
    %13 = vector.broadcast %cst_10 : f32 to vector<256x32xf32>
    %14 = arith.maximumf %12, %13 : vector<256x32xf32>
    %15 = arith.truncf %14 : vector<256x32xf32> to vector<256x32xbf16>
    %c0_11 = arith.constant 0 : index
    %c0_12 = arith.constant 0 : index
    %16 = vector.load %arg5[%c0_11, %c0_12] : memref<32x32xbf16, #tpu.memory_space<vmem>>, vector<32x32xbf16>
    %cst_13 = arith.constant dense<0.000000e+00> : vector<256x32xf32>
    %17 = tpu.matmul %15, %16, %cst_13 {dimension_numbers = #tpu.dot_dimension_numbers<[1], [0], [0], [1], [0, 0, 1, 1], [], []>} : vector<256x32xbf16>, vector<32x32xbf16>, vector<256x32xf32> -> vector<256x32xf32>
    %18 = arith.truncf %17 : vector<256x32xf32> to vector<256x32xbf16>
    %cst_14 = arith.constant dense<0.000000e+00> : vector<256x32xf32>
    %19 = tpu.matmul %2, %18, %cst_14 {dimension_numbers = #tpu.dot_dimension_numbers<[1], [0], [0], [1], [0, 0, 1, 1], [], []>} : vector<256x256xbf16>, vector<256x32xbf16>, vector<256x32xf32> -> vector<256x32xf32>
    %c0_15 = arith.constant 0 : index
    %c0_16 = arith.constant 0 : index
    %20 = vector.load %arg6[%c0_15, %c0_16] : memref<1x32xf32, #tpu.memory_space<vmem>>, vector<1x32xf32>
    %21 = vector.broadcast %20 : vector<1x32xf32> to vector<256x32xf32>
    %22 = arith.addf %19, %21 : vector<256x32xf32>
    %cst_17 = arith.constant 0.000000e+00 : f32
    %23 = vector.broadcast %cst_17 : f32 to vector<256x32xf32>
    %24 = arith.maximumf %22, %23 : vector<256x32xf32>
    %c0_18 = arith.constant 0 : index
    %c0_19 = arith.constant 0 : index
    %c0_20 = arith.constant 0 : index
    %25 = vector.load %arg7[%c0_18, %c0_19, %c0_20] : memref<1x256x32xf32, #tpu.memory_space<vmem>>, vector<1x256x32xf32>
    %26 = vector.shape_cast %25 : vector<1x256x32xf32> to vector<256x32xf32>
    %27 = vector.shape_cast %24 : vector<256x32xf32> to vector<1x256x32xf32>
    tpu.vector_store %arg7[%c0_18, %c0_19, %c0_20], %27 {strides = array<i32>} : memref<1x256x32xf32, #tpu.memory_space<vmem>>, vector<1x256x32xf32>,
    return
  }
  func.func @transform_0(%arg0: i32) -> (i32, i32, i32) {
    %c0_i32 = arith.constant 0 : i32
    %c0_i32_0 = arith.constant 0 : i32
    %c0_i32_1 = arith.constant 0 : i32
    return %arg0, %c0_i32, %c0_i32_0 : i32, i32, i32
  }
  func.func @transform_1(%arg0: i32) -> (i32, i32, i32) {
    %c0_i32 = arith.constant 0 : i32
    %c0_i32_0 = arith.constant 0 : i32
    %c0_i32_1 = arith.constant 0 : i32
    return %arg0, %c0_i32, %c0_i32_0 : i32, i32, i32
  }
  func.func @transform_2(%arg0: i32) -> (i32, i32) {
    %c0_i32 = arith.constant 0 : i32
    %c0_i32_0 = arith.constant 0 : i32
    %c0_i32_1 = arith.constant 0 : i32
    return %c0_i32, %c0_i32_0 : i32, i32
  }
  func.func @transform_3(%arg0: i32) -> (i32, i32) {
    %c0_i32 = arith.constant 0 : i32
    %c0_i32_0 = arith.constant 0 : i32
    %c0_i32_1 = arith.constant 0 : i32
    return %c0_i32, %c0_i32_0 : i32, i32
  }
  func.func @transform_4(%arg0: i32) -> (i32, i32) {
    %c0_i32 = arith.constant 0 : i32
    %c0_i32_0 = arith.constant 0 : i32
    %c0_i32_1 = arith.constant 0 : i32
    return %c0_i32, %c0_i32_0 : i32, i32
  }
  func.func @transform_5(%arg0: i32) -> (i32, i32) {
    %c0_i32 = arith.constant 0 : i32
    %c0_i32_0 = arith.constant 0 : i32
    %c0_i32_1 = arith.constant 0 : i32
    return %c0_i32, %c0_i32_0 : i32, i32
  }
  func.func @transform_6(%arg0: i32) -> (i32, i32, i32) {
    %c0_i32 = arith.constant 0 : i32
    %c0_i32_0 = arith.constant 0 : i32
    %c0_i32_1 = arith.constant 0 : i32
    return %arg0, %c0_i32, %c0_i32_0 : i32, i32, i32
  }
}

</mosaic_0001>

<llo_original>
// kernel: combine_flexible_gnn.1
$region0: #{combine_flexible_gnn.1}
  #allocation0 [shape = 'u32[]', space=smem, size = 0x4, offset = 0x4, fixed_abs, tag = 'smem constant byte address 0x4 - core index']
  #allocation1 [shape = 'u32[144,128]{1,0:T(1,128)}', space=vmem, size = 0x12000, scoped, tag = 'internal scratch']
  %s0 = inlined_call_operand.hbm [shape: f32[2,256,256], index: 0, kind: input, shape index: {}]
  %s1 = inlined_call_operand.vmem [shape: f32[2,256,32], index: 1, kind: input, shape index: {}]
  %s2 = inlined_call_operand.vmem [shape: bf16[32,32], index: 2, kind: input, shape index: {}]
  %s3 = inlined_call_operand.vmem [shape: f32[1,32], index: 3, kind: input, shape index: {}]
  %s4 = inlined_call_operand.vmem [shape: bf16[32,32], index: 4, kind: input, shape index: {}]
  %s5 = inlined_call_operand.vmem [shape: f32[1,32], index: 5, kind: input, shape index: {}]
  %s6 = inlined_call_operand.vmem [shape: f32[2,256,32], index: 6, kind: output, shape index: {}]
  %s7 = sld [smem:[#allocation0]]
  $region61: #{combine_flexible_gnn.1} parent=0
    _
  %s9 = ssub.s32 1, %s7
  %s10 = scalar_select 0, %s9, %s7
  $region1: #{combine_flexible_gnn.1} parent=0
    #allocation2 [shape = 'u8[524288]{0}', space=vmem, size = 0x80000, scoped, tag = 'input window, operand 0']
    #allocation3 [shape = 's32[2]{0}', space=sflag, size = 0x8, scoped, tag = 'scoped memory for combine_flexible_gnn.1']
    %11 = vsyncpa [#allocation3], 0
    %s12 = scalar_lea.sflag [#allocation3], 1
    %13 = vsyncpa %s12, 0
    loop: start=0, step=1, limit=4
    $region2: #{combine_flexible_gnn.1} parent=1 // loop_pre_header
      _
    $region3: #{combine_flexible_gnn.1} parent=1 // loop_header
      %s15 = sphi 0, %s19
      %p16 = scmp.ge.s32.totalorder %s15, 4
      %s25 = sphi 0, %s27
      %s28 = sphi 0, %s25
      %s29 = sphi 0, %s28
      %s45 = sphi 0, %s29
      %s51 = sphi 0, %s53
      %s54 = sphi 0, %s51
      %s55 = sphi 0, %s54
      %s71 = sphi 0, %s55
      %s75 = sphi 0, %s75
      %s77 = sphi 0, %s75
      %s78 = sphi 0, %s77
      %s92 = sphi 0, %s78
      %s96 = sphi 0, %s96
      %s98 = sphi 0, %s96
      %s99 = sphi 0, %s98
      %s113 = sphi 0, %s99
      %s117 = sphi 0, %s117
      %s119 = sphi 0, %s117
      %s120 = sphi 0, %s119
      %s134 = sphi 0, %s120
      %s138 = sphi 0, %s138
      %s140 = sphi 0, %s138
      %s141 = sphi 0, %s140
      %s155 = sphi 0, %s141
      %s161 = sphi 0, %s163
      %s164 = sphi 0, %s161
      %s165 = sphi 0, %s164
      %s181 = sphi 0, %s165
    $region4: #{combine_flexible_gnn.1} parent=1 // loop_header_branch
      %18 = sbr.rel (%p16) target = $region8
    $region5: #{combine_flexible_gnn.1} parent=1 // loop_body
      %s20 = ssub.s32 %s15, 1
      %s21 = ssub.s32 %s15, 2
      %s22 = sadd.s32 %s15, 1
      %s23 = ssub.s32 %s15, %s22
      %p24 = scmp.eq.s32.totalorder %s23, 0
      %s26 = sadd.s32 %s25, 1
      %s27 = scalar_select %p24, %s25, %s26
      %p30 = pneg %p24
      %p31 = scmp.eq.s32.totalorder %s15, 1
      %p32 = por %p30, %p31
      %p33 = scmp.ne.s32.totalorder %s25, %s28
      %p34 = scmp.eq.s32.totalorder %s15, 0
      %p35 = por %p33, %p34
      %p36 = scmp.ne.s32.totalorder %s25, %s28
      %p37 = scmp.eq.s32.totalorder %s20, 1
      %p38 = por %p36, %p37
      %p39 = scmp.ne.s32.totalorder %s28, %s29
      %p40 = scmp.eq.s32.totalorder %s20, 0
      %p41 = por %p39, %p40
      %p42 = scmp.ne.s32.totalorder %s28, %s29
      %p43 = scmp.eq.s32.totalorder %s21, 1
      %p44 = por %p42, %p43
      %p46 = scmp.ne.s32.totalorder %s29, %s45
      %p47 = scmp.eq.s32.totalorder %s21, 0
      %p48 = por %p46, %p47
      %s49 = ssub.s32 %s15, %s22
      %p50 = scmp.eq.s32.totalorder %s49, 0
      %s52 = sadd.s32 %s51, 1
      %s53 = scalar_select %p50, %s51, %s52
      %p56 = pneg %p50
      %p57 = scmp.eq.s32.totalorder %s15, 1
      %p58 = por %p56, %p57
      %p59 = scmp.ne.s32.totalorder %s51, %s54
      %p60 = scmp.eq.s32.totalorder %s15, 0
      %p61 = por %p59, %p60
      %p62 = scmp.ne.s32.totalorder %s51, %s54
      %p63 = scmp.eq.s32.totalorder %s20, 1
      %p64 = por %p62, %p63
      %p65 = scmp.ne.s32.totalorder %s54, %s55
      %p66 = scmp.eq.s32.totalorder %s20, 0
      %p67 = por %p65, %p66
      %p68 = scmp.ne.s32.totalorder %s54, %s55
      %p69 = scmp.eq.s32.totalorder %s21, 1
      %p70 = por %p68, %p69
      %p72 = scmp.ne.s32.totalorder %s55, %s71
      %p73 = scmp.eq.s32.totalorder %s21, 0
      %p74 = por %p72, %p73
      %s76 = sadd.s32 %s75, 1
      %p79 = scmp.eq.s32.totalorder %s15, 1
      %p80 = scmp.ne.s32.totalorder %s75, %s77
      %p81 = scmp.eq.s32.totalorder %s15, 0
      %p82 = por %p80, %p81
      %p83 = scmp.ne.s32.totalorder %s75, %s77
      %p84 = scmp.eq.s32.totalorder %s20, 1
      %p85 = por %p83, %p84
      %p86 = scmp.ne.s32.totalorder %s77, %s78
      %p87 = scmp.eq.s32.totalorder %s20, 0
      %p88 = por %p86, %p87
      %p89 = scmp.ne.s32.totalorder %s77, %s78
      %p90 = scmp.eq.s32.totalorder %s21, 1
      %p91 = por %p89, %p90
      %p93 = scmp.ne.s32.totalorder %s78, %s92
      %p94 = scmp.eq.s32.totalorder %s21, 0
      %p95 = por %p93, %p94
      %s97 = sadd.s32 %s96, 1
      %p100 = scmp.eq.s32.totalorder %s15, 1
      %p101 = scmp.ne.s32.totalorder %s96, %s98
      %p102 = scmp.eq.s32.totalorder %s15, 0
      %p103 = por %p101, %p102
      %p104 = scmp.ne.s32.totalorder %s96, %s98
      %p105 = scmp.eq.s32.totalorder %s20, 1
      %p106 = por %p104, %p105
      %p107 = scmp.ne.s32.totalorder %s98, %s99
      %p108 = scmp.eq.s32.totalorder %s20, 0
      %p109 = por %p107, %p108
      %p110 = scmp.ne.s32.totalorder %s98, %s99
      %p111 = scmp.eq.s32.totalorder %s21, 1
      %p112 = por %p110, %p111
      %p114 = scmp.ne.s32.totalorder %s99, %s113
      %p115 = scmp.eq.s32.totalorder %s21, 0
      %p116 = por %p114, %p115
      %s118 = sadd.s32 %s117, 1
      %p121 = scmp.eq.s32.totalorder %s15, 1
      %p122 = scmp.ne.s32.totalorder %s117, %s119
      %p123 = scmp.eq.s32.totalorder %s15, 0
      %p124 = por %p122, %p123
      %p125 = scmp.ne.s32.totalorder %s117, %s119
      %p126 = scmp.eq.s32.totalorder %s20, 1
      %p127 = por %p125, %p126
      %p128 = scmp.ne.s32.totalorder %s119, %s120
      %p129 = scmp.eq.s32.totalorder %s20, 0
      %p130 = por %p128, %p129
      %p131 = scmp.ne.s32.totalorder %s119, %s120
      %p132 = scmp.eq.s32.totalorder %s21, 1
      %p133 = por %p131, %p132
      %p135 = scmp.ne.s32.totalorder %s120, %s134
      %p136 = scmp.eq.s32.totalorder %s21, 0
      %p137 = por %p135, %p136
      %s139 = sadd.s32 %s138, 1
      %p142 = scmp.eq.s32.totalorder %s15, 1
      %p143 = scmp.ne.s32.totalorder %s138, %s140
      %p144 = scmp.eq.s32.totalorder %s15, 0
      %p145 = por %p143, %p144
      %p146 = scmp.ne.s32.totalorder %s138, %s140
      %p147 = scmp.eq.s32.totalorder %s20, 1
      %p148 = por %p146, %p147
      %p149 = scmp.ne.s32.totalorder %s140, %s141
      %p150 = scmp.eq.s32.totalorder %s20, 0
      %p151 = por %p149, %p150
      %p152 = scmp.ne.s32.totalorder %s140, %s141
      %p153 = scmp.eq.s32.totalorder %s21, 1
      %p154 = por %p152, %p153
      %p156 = scmp.ne.s32.totalorder %s141, %s155
      %p157 = scmp.eq.s32.totalorder %s21, 0
      %p158 = por %p156, %p157
      %s159 = ssub.s32 %s15, %s22
      %p160 = scmp.eq.s32.totalorder %s159, 0
      %s162 = sadd.s32 %s161, 1
      %s163 = scalar_select %p160, %s161, %s162
      %p166 = pneg %p160
      %p167 = scmp.eq.s32.totalorder %s15, 1
      %p168 = por %p166, %p167
      %p169 = scmp.ne.s32.totalorder %s161, %s164
      %p170 = scmp.eq.s32.totalorder %s15, 0
      %p171 = por %p169, %p170
      %p172 = scmp.ne.s32.totalorder %s161, %s164
      %p173 = scmp.eq.s32.totalorder %s20, 1
      %p174 = por %p172, %p173
      %p175 = scmp.ne.s32.totalorder %s164, %s165
      %p176 = scmp.eq.s32.totalorder %s20, 0
      %p177 = por %p175, %p176
      %p178 = scmp.ne.s32.totalorder %s164, %s165
      %p179 = scmp.eq.s32.totalorder %s21, 1
      %p180 = por %p178, %p179
      %p182 = scmp.ne.s32.totalorder %s165, %s181
      %p183 = scmp.eq.s32.totalorder %s21, 0
      %p184 = por %p182, %p183
      %p185 = scmp.le.s32.totalorder 1, %s15
      %p186 = scmp.lt.s32.totalorder %s15, 3
      %p187 = pnand %p185, %p186
      %p188 = pneg %p187
      // Predicated region
      $region9: #{combine_flexible_gnn.1} parent=5 // pred_check
        _
      $region10: #{combine_flexible_gnn.1} parent=5 // pred_check_branch
        %190 = sbr.rel (%p187) target = $region12
      $region11: #{combine_flexible_gnn.1} parent=5 // pred_region
        %s191 = ssub.s32 %s15, 1
        // Predicated region
        $region13: #{combine_flexible_gnn.1} parent=11 // pred_check
          %p192 = pneg %p88
        $region14: #{combine_flexible_gnn.1} parent=11 // pred_check_branch
          %194 = sbr.rel (%p192) target = $region16
        $region15: #{combine_flexible_gnn.1} parent=11 // pred_region
          _
        $region16: #{combine_flexible_gnn.1} parent=11 // pred_fallthru
          _
        // Predicated region
        $region17: #{combine_flexible_gnn.1} parent=11 // pred_check
          %p195 = pneg %p109
        $region18: #{combine_flexible_gnn.1} parent=11 // pred_check_branch
          %197 = sbr.rel (%p195) target = $region20
        $region19: #{combine_flexible_gnn.1} parent=11 // pred_region
          _
        $region20: #{combine_flexible_gnn.1} parent=11 // pred_fallthru
          _
        // Predicated region
        $region21: #{combine_flexible_gnn.1} parent=11 // pred_check
          %p198 = pneg %p130
        $region22: #{combine_flexible_gnn.1} parent=11 // pred_check_branch
          %200 = sbr.rel (%p198) target = $region24
        $region23: #{combine_flexible_gnn.1} parent=11 // pred_region
          _
        $region24: #{combine_flexible_gnn.1} parent=11 // pred_fallthru
          _
        // Predicated region
        $region25: #{combine_flexible_gnn.1} parent=11 // pred_check
          %p201 = pneg %p151
        $region26: #{combine_flexible_gnn.1} parent=11 // pred_check_branch
          %203 = sbr.rel (%p201) target = $region28
        $region27: #{combine_flexible_gnn.1} parent=11 // pred_region
          _
        $region28: #{combine_flexible_gnn.1} parent=11 // pred_fallthru
          _
      $region12: #{combine_flexible_gnn.1} parent=5 // pred_fallthru
        _
      %p204 = scmp.lt.s32.totalorder %s15, 2
      // Predicated region
      $region29: #{combine_flexible_gnn.1} parent=5 // pred_check
        %p205 = pneg %p204
      $region30: #{combine_flexible_gnn.1} parent=5 // pred_check_branch
        %207 = sbr.rel (%p205) target = $region32
      $region31: #{combine_flexible_gnn.1} parent=5 // pred_region
        // Predicated region
        $region33: #{combine_flexible_gnn.1} parent=31 // pred_check
          %p208 = pneg %p35
        $region34: #{combine_flexible_gnn.1} parent=31 // pred_check_branch
          %210 = sbr.rel (%p208) target = $region36
        $region35: #{combine_flexible_gnn.1} parent=31 // pred_region
          %s211 = sand.u32 %s25, 1
          %s212 = scalar_lea.sflag [#allocation3], %s211
          %s213 = sand.u32 %s25, 1
          %s214 = smul.addr %s213, 512
          %s215 = scalar_lea.vmem [#allocation2], %s214
          %s217 = ssub.s32 8192, 8192
          %218 = vsyncadd %s212, %s217
          %s219 = smul.addr %s15, 64
          %s220 = smul.addr %s219, 128
          %s221 = scalar_lea.hbm %s0, %s220
          %s222 = sshll.u32 %s215, 4
          %s223 = int_to_ptr.vmem [resolvable:$true] %s222
          %228 = dma.hbm_to_vmem [thread:$0]  %s221, 8192, %s223, %s212, 256, 256, 16
        $region36: #{combine_flexible_gnn.1} parent=31 // pred_fallthru
          _
        // Predicated region
        $region37: #{combine_flexible_gnn.1} parent=31 // pred_check
          %p229 = pneg %p61
        $region38: #{combine_flexible_gnn.1} parent=31 // pred_check_branch
          %231 = sbr.rel (%p229) target = $region40
        $region39: #{combine_flexible_gnn.1} parent=31 // pred_region
          %p232 = scmp.lt.s32.totalorder %s15, 1
          %s233 = scalar_select %p232, %s15, 1
          %s234 = smul.addr %s233, 32
          %s235 = smul.addr %s234, 8
          %s236 = scalar_lea.vmem %s1, %s235
        $region40: #{combine_flexible_gnn.1} parent=31 // pred_fallthru
          _
      $region32: #{combine_flexible_gnn.1} parent=5 // pred_fallthru
        _
      %p237 = scmp.le.s32.totalorder 1, %s15
      %p238 = scmp.lt.s32.totalorder %s15, 3
      %p239 = pnand %p237, %p238
      %p240 = pneg %p239
      // Predicated region
      $region41: #{combine_flexible_gnn.1} parent=5 // pred_check
        _
      $region42: #{combine_flexible_gnn.1} parent=5 // pred_check_branch
        %242 = sbr.rel (%p239) target = $region44
      $region43: #{combine_flexible_gnn.1} parent=5 // pred_region
        %s243 = ssub.s32 %s15, 1
        %s244 = sand.u32 %s28, 1
        %s245 = scalar_lea.sflag [#allocation3], %s244
        %s246 = sand.u32 %s28, 1
        %s247 = smul.addr %s246, 512
        %s248 = scalar_lea.vmem [#allocation2], %s247
        // Predicated region
        $region45: #{combine_flexible_gnn.1} parent=43 // pred_check
          %p249 = pneg %p41
        $region46: #{combine_flexible_gnn.1} parent=43 // pred_check_branch
          %251 = sbr.rel (%p249) target = $region48
        $region47: #{combine_flexible_gnn.1} parent=43 // pred_region
          %252 = dma.done %s245, 8192
        $region48: #{combine_flexible_gnn.1} parent=43 // pred_fallthru
          _
        %s253 = sand.u32 %s28, 1
        %s254 = scalar_lea.sflag [#allocation3], %s253
        %s255 = sand.u32 %s28, 1
        %s256 = smul.addr %s255, 512
        %s257 = scalar_lea.vmem [#allocation2], %s256
        %p258 = pneg %p41
        %p259 = pneg %p38
        %p260 = scmp.lt.s32.totalorder %s20, 1
        %s261 = scalar_select %p260, %s20, 1
        %s262 = smul.addr %s261, 32
        %s263 = smul.addr %s262, 8
        %s264 = scalar_lea.vmem %s1, %s263
        %p265 = pneg %p67
        %p266 = pneg %p64
        %p267 = pneg %p88
        %p268 = pneg %p85
        %p269 = pneg %p109
        %p270 = pneg %p106
        %p271 = pneg %p130
        %p272 = pneg %p127
        %p273 = pneg %p151
        %p274 = pneg %p148
        %p275 = pneg %p177
        %p276 = pneg %p174
        %p277 = scmp.lt.s32.totalorder %s20, 1
        %s278 = scalar_select %p277, %s20, 1
        %s279 = smul.addr %s278, 32
        %s280 = smul.addr %s279, 8
        %s281 = scalar_lea.vmem %s6, %s280
        %p282 = scmp.lt.s32.totalorder %s20, 1
        %s283 = scalar_select %p282, %s20, 1
        %s284 = smul.addr %s283, 32
        %s285 = smul.addr %s284, 8
        %s286 = scalar_lea.vmem %s1, %s285
        %p287 = scmp.lt.s32.totalorder %s20, 1
        %s288 = scalar_select %p287, %s20, 1
        %s289 = smul.addr %s288, 32
        %s290 = smul.addr %s289, 8
        %s291 = scalar_lea.vmem %s6, %s290
        %v293 = vld [vmem:[%s248] sm:$0xff]
        %v294 = vld [vmem:[%s248 + $0x8] sm:$0xff]
        %v295 = vld [vmem:[%s248 + $0x10] sm:$0xff]
        %v296 = vld [vmem:[%s248 + $0x18] sm:$0xff]
        %v297 = vld [vmem:[%s248 + $0x20] sm:$0xff]
        %v298 = vld [vmem:[%s248 + $0x28] sm:$0xff]
        %v299 = vld [vmem:[%s248 + $0x30] sm:$0xff]
        %v300 = vld [vmem:[%s248 + $0x38] sm:$0xff]
        %v301 = vld [vmem:[%s248 + $0x40] sm:$0xff]
        %v302 = vld [vmem:[%s248 + $0x48] sm:$0xff]
        %v303 = vld [vmem:[%s248 + $0x50] sm:$0xff]
        %v304 = vld [vmem:[%s248 + $0x58] sm:$0xff]
        %v305 = vld [vmem:[%s248 + $0x60] sm:$0xff]
        %v306 = vld [vmem:[%s248 + $0x68] sm:$0xff]
        %v307 = vld [vmem:[%s248 + $0x70] sm:$0xff]
        %v308 = vld [vmem:[%s248 + $0x78] sm:$0xff]
        %v309 = vld [vmem:[%s248 + $0x80] sm:$0xff]
        %v310 = vld [vmem:[%s248 + $0x88] sm:$0xff]
        %v311 = vld [vmem:[%s248 + $0x90] sm:$0xff]
        %v312 = vld [vmem:[%s248 + $0x98] sm:$0xff]
        %v313 = vld [vmem:[%s248 + $0xa0] sm:$0xff]
        %v314 = vld [vmem:[%s248 + $0xa8] sm:$0xff]
        %v315 = vld [vmem:[%s248 + $0xb0] sm:$0xff]
        %v316 = vld [vmem:[%s248 + $0xb8] sm:$0xff]
        %v317 = vld [vmem:[%s248 + $0xc0] sm:$0xff]
        %v318 = vld [vmem:[%s248 + $0xc8] sm:$0xff]
        %v319 = vld [vmem:[%s248 + $0xd0] sm:$0xff]
        %v320 = vld [vmem:[%s248 + $0xd8] sm:$0xff]
        %v321 = vld [vmem:[%s248 + $0xe0] sm:$0xff]
        %v322 = vld [vmem:[%s248 + $0xe8] sm:$0xff]
        %v323 = vld [vmem:[%s248 + $0xf0] sm:$0xff]
        %v324 = vld [vmem:[%s248 + $0xf8] sm:$0xff]
        %v325 = vld [vmem:[%s248 + $0x100] sm:$0xff]
        %v326 = vld [vmem:[%s248 + $0x108] sm:$0xff]
        %v327 = vld [vmem:[%s248 + $0x110] sm:$0xff]
        %v328 = vld [vmem:[%s248 + $0x118] sm:$0xff]
        %v329 = vld [vmem:[%s248 + $0x120] sm:$0xff]
        %v330 = vld [vmem:[%s248 + $0x128] sm:$0xff]
        %v331 = vld [vmem:[%s248 + $0x130] sm:$0xff]
        %v332 = vld [vmem:[%s248 + $0x138] sm:$0xff]
        %v333 = vld [vmem:[%s248 + $0x140] sm:$0xff]
        %v334 = vld [vmem:[%s248 + $0x148] sm:$0xff]
        %v335 = vld [vmem:[%s248 + $0x150] sm:$0xff]
        %v336 = vld [vmem:[%s248 + $0x158] sm:$0xff]
        %v337 = vld [vmem:[%s248 + $0x160] sm:$0xff]
        %v338 = vld [vmem:[%s248 + $0x168] sm:$0xff]
        %v339 = vld [vmem:[%s248 + $0x170] sm:$0xff]
        %v340 = vld [vmem:[%s248 + $0x178] sm:$0xff]
        %v341 = vld [vmem:[%s248 + $0x180] sm:$0xff]
        %v342 = vld [vmem:[%s248 + $0x188] sm:$0xff]
        %v343 = vld [vmem:[%s248 + $0x190] sm:$0xff]
        %v344 = vld [vmem:[%s248 + $0x198] sm:$0xff]
        %v345 = vld [vmem:[%s248 + $0x1a0] sm:$0xff]
        %v346 = vld [vmem:[%s248 + $0x1a8] sm:$0xff]
        %v347 = vld [vmem:[%s248 + $0x1b0] sm:$0xff]
        %v348 = vld [vmem:[%s248 + $0x1b8] sm:$0xff]
        %v349 = vld [vmem:[%s248 + $0x1c0] sm:$0xff]
        %v350 = vld [vmem:[%s248 + $0x1c8] sm:$0xff]
        %v351 = vld [vmem:[%s248 + $0x1d0] sm:$0xff]
        %v352 = vld [vmem:[%s248 + $0x1d8] sm:$0xff]
        %v353 = vld [vmem:[%s248 + $0x1e0] sm:$0xff]
        %v354 = vld [vmem:[%s248 + $0x1e8] sm:$0xff]
        %v355 = vld [vmem:[%s248 + $0x1f0] sm:$0xff]
        %v356 = vld [vmem:[%s248 + $0x1f8] sm:$0xff]
        %v357 = vpack.c.bf16 %v295, %v293
        %v358 = vpack.c.bf16 %v296, %v294
        %v359 = vpack.c.bf16 %v299, %v297
        %v360 = vpack.c.bf16 %v300, %v298
        %v361 = vpack.c.bf16 %v303, %v301
        %v362 = vpack.c.bf16 %v304, %v302
        %v363 = vpack.c.bf16 %v307, %v305
        %v364 = vpack.c.bf16 %v308, %v306
        %v365 = vpack.c.bf16 %v311, %v309
        %v366 = vpack.c.bf16 %v312, %v310
        %v367 = vpack.c.bf16 %v315, %v313
        %v368 = vpack.c.bf16 %v316, %v314
        %v369 = vpack.c.bf16 %v319, %v317
        %v370 = vpack.c.bf16 %v320, %v318
        %v371 = vpack.c.bf16 %v323, %v321
        %v372 = vpack.c.bf16 %v324, %v322
        %v373 = vpack.c.bf16 %v327, %v325
        %v374 = vpack.c.bf16 %v328, %v326
        %v375 = vpack.c.bf16 %v331, %v329
        %v376 = vpack.c.bf16 %v332, %v330
        %v377 = vpack.c.bf16 %v335, %v333
        %v378 = vpack.c.bf16 %v336, %v334
        %v379 = vpack.c.bf16 %v339, %v337
        %v380 = vpack.c.bf16 %v340, %v338
        %v381 = vpack.c.bf16 %v343, %v341
        %v382 = vpack.c.bf16 %v344, %v342
        %v383 = vpack.c.bf16 %v347, %v345
        %v384 = vpack.c.bf16 %v348, %v346
        %v385 = vpack.c.bf16 %v351, %v349
        %v386 = vpack.c.bf16 %v352, %v350
        %v387 = vpack.c.bf16 %v355, %v353
        %v388 = vpack.c.bf16 %v356, %v354
        %v389 = vld [vmem:[%s286] sm:$0xff]
        %v390 = vld [vmem:[%s286 + $0x8] sm:$0xff]
        %v391 = vld [vmem:[%s286 + $0x10] sm:$0xff]
        %v392 = vld [vmem:[%s286 + $0x18] sm:$0xff]
        %v393 = vld [vmem:[%s286 + $0x20] sm:$0xff]
        %v394 = vld [vmem:[%s286 + $0x28] sm:$0xff]
        %v395 = vld [vmem:[%s286 + $0x30] sm:$0xff]
        %v396 = vld [vmem:[%s286 + $0x38] sm:$0xff]
        %v397 = vld [vmem:[%s286 + $0x40] sm:$0xff]
        %v398 = vld [vmem:[%s286 + $0x48] sm:$0xff]
        %v399 = vld [vmem:[%s286 + $0x50] sm:$0xff]
        %v400 = vld [vmem:[%s286 + $0x58] sm:$0xff]
        %v401 = vld [vmem:[%s286 + $0x60] sm:$0xff]
        %v402 = vld [vmem:[%s286 + $0x68] sm:$0xff]
        %v403 = vld [vmem:[%s286 + $0x70] sm:$0xff]
        %v404 = vld [vmem:[%s286 + $0x78] sm:$0xff]
        %v405 = vld [vmem:[%s286 + $0x80] sm:$0xff]
        %v406 = vld [vmem:[%s286 + $0x88] sm:$0xff]
        %v407 = vld [vmem:[%s286 + $0x90] sm:$0xff]
        %v408 = vld [vmem:[%s286 + $0x98] sm:$0xff]
        %v409 = vld [vmem:[%s286 + $0xa0] sm:$0xff]
        %v410 = vld [vmem:[%s286 + $0xa8] sm:$0xff]
        %v411 = vld [vmem:[%s286 + $0xb0] sm:$0xff]
        %v412 = vld [vmem:[%s286 + $0xb8] sm:$0xff]
        %v413 = vld [vmem:[%s286 + $0xc0] sm:$0xff]
        %v414 = vld [vmem:[%s286 + $0xc8] sm:$0xff]
        %v415 = vld [vmem:[%s286 + $0xd0] sm:$0xff]
        %v416 = vld [vmem:[%s286 + $0xd8] sm:$0xff]
        %v417 = vld [vmem:[%s286 + $0xe0] sm:$0xff]
        %v418 = vld [vmem:[%s286 + $0xe8] sm:$0xff]
        %v419 = vld [vmem:[%s286 + $0xf0] sm:$0xff]
        %v420 = vld [vmem:[%s286 + $0xf8] sm:$0xff]
        %v421 = vpack.c.bf16 %v390, %v389
        %v422 = vpack.c.bf16 %v392, %v391
        %v423 = vpack.c.bf16 %v394, %v393
        %v424 = vpack.c.bf16 %v396, %v395
        %v425 = vpack.c.bf16 %v398, %v397
        %v426 = vpack.c.bf16 %v400, %v399
        %v427 = vpack.c.bf16 %v402, %v401
        %v428 = vpack.c.bf16 %v404, %v403
        %v429 = vpack.c.bf16 %v406, %v405
        %v430 = vpack.c.bf16 %v408, %v407
        %v431 = vpack.c.bf16 %v410, %v409
        %v432 = vpack.c.bf16 %v412, %v411
        %v433 = vpack.c.bf16 %v414, %v413
        %v434 = vpack.c.bf16 %v416, %v415
        %v435 = vpack.c.bf16 %v418, %v417
        %v436 = vpack.c.bf16 %v420, %v419
        %v437 = vld [vmem:[%s2] sm:$0xf]
        %v438 = vld [vmem:[%s2 + $0x4] sm:$0xf]
        %v439 = vld [vmem:[%s2 + $0x8] sm:$0xf]
        %v440 = vld [vmem:[%s2 + $0xc] sm:$0xf]
        %v445 = vunpack.c.l.b16 %v437
        %v446 = vunpack.c.l.b16 %v438
        %v447 = vunpack.c.l.b16 %v439
        %v448 = vunpack.c.l.b16 %v440
        %v449 = vpack.c.b16 %v446, %v445
        %v450 = vpack.c.b16 %v448, %v447
        %vm453 = vcmask 261120
        %v455 = vsel %vm453, %v421, 0
        %v458 = vsel %vm453, %v422, 0
        %v461 = vsel %vm453, %v423, 0
        %v464 = vsel %vm453, %v424, 0
        %v467 = vsel %vm453, %v425, 0
        %v470 = vsel %vm453, %v426, 0
        %v473 = vsel %vm453, %v427, 0
        %v476 = vsel %vm453, %v428, 0
        %v479 = vsel %vm453, %v429, 0
        %v482 = vsel %vm453, %v430, 0
        %v485 = vsel %vm453, %v431, 0
        %v488 = vsel %vm453, %v432, 0
        %v491 = vsel %vm453, %v433, 0
        %v494 = vsel %vm453, %v434, 0
        %v497 = vsel %vm453, %v435, 0
        %v500 = vsel %vm453, %v436, 0
        %502 = vmatprep.subr.bf16.mxu0 0
        %503 = vmatpush1.bf16.msra.mxu0 0
        %504 = vmatprep.subr.bf16.mxu0 0
        %505 = vmatpush1.bf16.msra.mxu0 0
        %506 = vmatprep.subr.bf16.mxu0 0
        %507 = vmatpush1.bf16.msra.mxu0 0
        %508 = vmatprep.subr.bf16.mxu0 0
        %509 = vmatpush1.bf16.msra.mxu0 0
        %510 = vmatprep.subr.bf16.mxu0 0
        %511 = vmatpush1.bf16.msra.mxu0 0
        %512 = vmatprep.subr.bf16.mxu0 0
        %513 = vmatpush1.bf16.msra.mxu0 0
        %514 = vmatprep.subr.bf16.mxu0 0
        %515 = vmatpush1.bf16.msra.mxu0 %v450
        %516 = vmatprep.subr.bf16.mxu0 0
        %517 = vmatpush1.bf16.msra.mxu0 %v449
        %518 = vmatprep.subr.bf16.mxu0 0
        %519 = vmatpush2.bf16.msra.mxu0 0
        %520 = vmatprep.subr.bf16.mxu0 0
        %521 = vmatpush2.bf16.msra.mxu0 0
        %522 = vmatprep.subr.bf16.mxu0 0
        %523 = vmatpush2.bf16.msra.mxu0 0
        %524 = vmatprep.subr.bf16.mxu0 0
        %525 = vmatpush2.bf16.msra.mxu0 0
        %526 = vmatprep.subr.bf16.mxu0 0
        %527 = vmatpush2.bf16.msra.mxu0 0
        %528 = vmatprep.subr.bf16.mxu0 0
        %529 = vmatpush2.bf16.msra.mxu0 0
        %530 = vmatprep.subr.bf16.mxu0 0
        %531 = vmatpush2.bf16.msra.mxu0 0
        %532 = vmatprep.subr.bf16.mxu0 0
        %533 = vmatpush2.bf16.msra.mxu0 0
        %534 = vmatprep.mubr.bf16.mxu0 0
        %535 = vmatmul.mubr.bf16.gmra.mxu0 %v455
        %v536 = vpop.f32.mrf.mxu0
        %v537 = vadd.f32 0.0, %v536
        %v538 = vpop.f32.mrf.mxu0
        %v539 = vpop.f32.mrf.mxu0
        %v540 = vadd.f32 0.0, %v539
        %v541 = vpop.f32.mrf.mxu0
        %542 = vmatprep.mubr.bf16.mxu0 0
        %543 = vmatmul.mubr.bf16.gmra.mxu0 %v458
        %v544 = vpop.f32.mrf.mxu0
        %v545 = vadd.f32 0.0, %v544
        %v546 = vpop.f32.mrf.mxu0
        %v547 = vpop.f32.mrf.mxu0
        %v548 = vadd.f32 0.0, %v547
        %v549 = vpop.f32.mrf.mxu0
        %550 = vmatprep.mubr.bf16.mxu0 0
        %551 = vmatmul.mubr.bf16.gmra.mxu0 %v461
        %v552 = vpop.f32.mrf.mxu0
        %v553 = vadd.f32 0.0, %v552
        %v554 = vpop.f32.mrf.mxu0
        %v555 = vpop.f32.mrf.mxu0
        %v556 = vadd.f32 0.0, %v555
        %v557 = vpop.f32.mrf.mxu0
        %558 = vmatprep.mubr.bf16.mxu0 0
        %559 = vmatmul.mubr.bf16.gmra.mxu0 %v464
        %v560 = vpop.f32.mrf.mxu0
        %v561 = vadd.f32 0.0, %v560
        %v562 = vpop.f32.mrf.mxu0
        %v563 = vpop.f32.mrf.mxu0
        %v564 = vadd.f32 0.0, %v563
        %v565 = vpop.f32.mrf.mxu0
        %566 = vmatprep.mubr.bf16.mxu0 0
        %567 = vmatmul.mubr.bf16.gmra.mxu0 %v467
        %v568 = vpop.f32.mrf.mxu0
        %v569 = vadd.f32 0.0, %v568
        %v570 = vpop.f32.mrf.mxu0
        %v571 = vpop.f32.mrf.mxu0
        %v572 = vadd.f32 0.0, %v571
        %v573 = vpop.f32.mrf.mxu0
        %574 = vmatprep.mubr.bf16.mxu0 0
        %575 = vmatmul.mubr.bf16.gmra.mxu0 %v470
        %v576 = vpop.f32.mrf.mxu0
        %v577 = vadd.f32 0.0, %v576
        %v578 = vpop.f32.mrf.mxu0
        %v579 = vpop.f32.mrf.mxu0
        %v580 = vadd.f32 0.0, %v579
        %v581 = vpop.f32.mrf.mxu0
        %582 = vmatprep.mubr.bf16.mxu0 0
        %583 = vmatmul.mubr.bf16.gmra.mxu0 %v473
        %v584 = vpop.f32.mrf.mxu0
        %v585 = vadd.f32 0.0, %v584
        %v586 = vpop.f32.mrf.mxu0
        %v587 = vpop.f32.mrf.mxu0
        %v588 = vadd.f32 0.0, %v587
        %v589 = vpop.f32.mrf.mxu0
        %590 = vmatprep.mubr.bf16.mxu0 0
        %591 = vmatmul.mubr.bf16.gmra.mxu0 %v476
        %v592 = vpop.f32.mrf.mxu0
        %v593 = vadd.f32 0.0, %v592
        %v594 = vpop.f32.mrf.mxu0
        %v595 = vpop.f32.mrf.mxu0
        %v596 = vadd.f32 0.0, %v595
        %v597 = vpop.f32.mrf.mxu0
        %598 = vmatprep.mubr.bf16.mxu0 0
        %599 = vmatmul.mubr.bf16.gmra.mxu0 %v479
        %v600 = vpop.f32.mrf.mxu0
        %v601 = vadd.f32 0.0, %v600
        %v602 = vpop.f32.mrf.mxu0
        %v603 = vpop.f32.mrf.mxu0
        %v604 = vadd.f32 0.0, %v603
        %v605 = vpop.f32.mrf.mxu0
        %606 = vmatprep.mubr.bf16.mxu0 0
        %607 = vmatmul.mubr.bf16.gmra.mxu0 %v482
        %v608 = vpop.f32.mrf.mxu0
        %v609 = vadd.f32 0.0, %v608
        %v610 = vpop.f32.mrf.mxu0
        %v611 = vpop.f32.mrf.mxu0
        %v612 = vadd.f32 0.0, %v611
        %v613 = vpop.f32.mrf.mxu0
        %614 = vmatprep.mubr.bf16.mxu0 0
        %615 = vmatmul.mubr.bf16.gmra.mxu0 %v485
        %v616 = vpop.f32.mrf.mxu0
        %v617 = vadd.f32 0.0, %v616
        %v618 = vpop.f32.mrf.mxu0
        %v619 = vpop.f32.mrf.mxu0
        %v620 = vadd.f32 0.0, %v619
        %v621 = vpop.f32.mrf.mxu0
        %622 = vmatprep.mubr.bf16.mxu0 0
        %623 = vmatmul.mubr.bf16.gmra.mxu0 %v488
        %v624 = vpop.f32.mrf.mxu0
        %v625 = vadd.f32 0.0, %v624
        %v626 = vpop.f32.mrf.mxu0
        %v627 = vpop.f32.mrf.mxu0
        %v628 = vadd.f32 0.0, %v627
        %v629 = vpop.f32.mrf.mxu0
        %630 = vmatprep.mubr.bf16.mxu0 0
        %631 = vmatmul.mubr.bf16.gmra.mxu0 %v491
        %v632 = vpop.f32.mrf.mxu0
        %v633 = vadd.f32 0.0, %v632
        %v634 = vpop.f32.mrf.mxu0
        %v635 = vpop.f32.mrf.mxu0
        %v636 = vadd.f32 0.0, %v635
        %v637 = vpop.f32.mrf.mxu0
        %638 = vmatprep.mubr.bf16.mxu0 0
        %639 = vmatmul.mubr.bf16.gmra.mxu0 %v494
        %v640 = vpop.f32.mrf.mxu0
        %v641 = vadd.f32 0.0, %v640
        %v642 = vpop.f32.mrf.mxu0
        %v643 = vpop.f32.mrf.mxu0
        %v644 = vadd.f32 0.0, %v643
        %v645 = vpop.f32.mrf.mxu0
        %646 = vmatprep.mubr.bf16.mxu0 0
        %647 = vmatmul.mubr.bf16.gmra.mxu0 %v497
        %v648 = vpop.f32.mrf.mxu0
        %v649 = vadd.f32 0.0, %v648
        %v650 = vpop.f32.mrf.mxu0
        %v651 = vpop.f32.mrf.mxu0
        %v652 = vadd.f32 0.0, %v651
        %v653 = vpop.f32.mrf.mxu0
        %654 = vmatprep.mubr.bf16.mxu0 0
        %655 = vmatmul.mubr.bf16.gmra.mxu0 %v500
        %v656 = vpop.f32.mrf.mxu0
        %v657 = vadd.f32 0.0, %v656
        %v658 = vpop.f32.mrf.mxu0
        %v659 = vpop.f32.mrf.mxu0
        %v660 = vadd.f32 0.0, %v659
        %v661 = vpop.f32.mrf.mxu0
        %662 = vdwg.mxu0
        %v663 = vpack.c.bf16 %v540, %v537
        %v664 = vpack.c.bf16 %v548, %v545
        %v665 = vpack.c.bf16 %v556, %v553
        %v666 = vpack.c.bf16 %v564, %v561
        %v667 = vpack.c.bf16 %v572, %v569
        %v668 = vpack.c.bf16 %v580, %v577
        %v669 = vpack.c.bf16 %v588, %v585
        %v670 = vpack.c.bf16 %v596, %v593
        %v671 = vpack.c.bf16 %v604, %v601
        %v672 = vpack.c.bf16 %v612, %v609
        %v673 = vpack.c.bf16 %v620, %v617
        %v674 = vpack.c.bf16 %v628, %v625
        %v675 = vpack.c.bf16 %v636, %v633
        %v676 = vpack.c.bf16 %v644, %v641
        %v677 = vpack.c.bf16 %v652, %v649
        %v678 = vpack.c.bf16 %v660, %v657
        %v679 = vld [vmem:[%s3] sm:$0x1]
        %v681 = vlaneseq
        %v682 = vshrl.u32 %v681, 7
        %v683 = vsub.s32 0, %v682
        %v684 = vrot.slane %v679, %v683
        %686 = vmatprep.subr.bf16.mxu0 0
        %687 = vmatpush1.bf16.msra.mxu0 %v670
        %688 = vmatprep.subr.bf16.mxu0 0
        %689 = vmatpush1.bf16.msra.mxu0 %v669
        %690 = vmatprep.subr.bf16.mxu0 0
        %691 = vmatpush1.bf16.msra.mxu0 %v668
        %692 = vmatprep.subr.bf16.mxu0 0
        %693 = vmatpush1.bf16.msra.mxu0 %v667
        %694 = vmatprep.subr.bf16.mxu0 0
        %695 = vmatpush1.bf16.msra.mxu0 %v666
        %696 = vmatprep.subr.bf16.mxu0 0
        %697 = vmatpush1.bf16.msra.mxu0 %v665
        %698 = vmatprep.subr.bf16.mxu0 0
        %699 = vmatpush1.bf16.msra.mxu0 %v664
        %700 = vmatprep.subr.bf16.mxu0 0
        %701 = vmatpush1.bf16.msra.mxu0 %v663
        %702 = vmatprep.subr.bf16.mxu0 0
        %703 = vmatpush2.bf16.msra.mxu0 %v678
        %704 = vmatprep.subr.bf16.mxu0 0
        %705 = vmatpush2.bf16.msra.mxu0 %v677
        %706 = vmatprep.subr.bf16.mxu0 0
        %707 = vmatpush2.bf16.msra.mxu0 %v676
        %708 = vmatprep.subr.bf16.mxu0 0
        %709 = vmatpush2.bf16.msra.mxu0 %v675
        %710 = vmatprep.subr.bf16.mxu0 0
        %711 = vmatpush2.bf16.msra.mxu0 %v674
        %712 = vmatprep.subr.bf16.mxu0 0
        %713 = vmatpush2.bf16.msra.mxu0 %v673
        %714 = vmatprep.subr.bf16.mxu0 0
        %715 = vmatpush2.bf16.msra.mxu0 %v672
        %716 = vmatprep.subr.bf16.mxu0 0
        %717 = vmatpush2.bf16.msra.mxu0 %v671
        %718 = vmatprep.mubr.bf16.mxu0 %v358
        %719 = vmatmul.mubr.bf16.gmra.mxu0 %v357
        %v720 = vpop.f32.mrf.mxu0
        %v721 = vadd.f32 %v684, %v720
        %v722 = vpop.f32.mrf.mxu0
        %v723 = vpop.f32.mrf.mxu0
        %v724 = vadd.f32 %v684, %v723
        %v725 = vpop.f32.mrf.mxu0
        %726 = vmatprep.mubr.bf16.mxu0 %v360
        %727 = vmatmul.mubr.bf16.gmra.mxu0 %v359
        %v728 = vpop.f32.mrf.mxu0
        %v729 = vadd.f32 %v684, %v728
        %v730 = vpop.f32.mrf.mxu0
        %v731 = vpop.f32.mrf.mxu0
        %v732 = vadd.f32 %v684, %v731
        %v733 = vpop.f32.mrf.mxu0
        %734 = vmatprep.mubr.bf16.mxu0 %v362
        %735 = vmatmul.mubr.bf16.gmra.mxu0 %v361
        %v736 = vpop.f32.mrf.mxu0
        %v737 = vadd.f32 %v684, %v736
        %v738 = vpop.f32.mrf.mxu0
        %v739 = vpop.f32.mrf.mxu0
        %v740 = vadd.f32 %v684, %v739
        %v741 = vpop.f32.mrf.mxu0
        %742 = vmatprep.mubr.bf16.mxu0 %v364
        %743 = vmatmul.mubr.bf16.gmra.mxu0 %v363
        %v744 = vpop.f32.mrf.mxu0
        %v745 = vadd.f32 %v684, %v744
        %v746 = vpop.f32.mrf.mxu0
        %v747 = vpop.f32.mrf.mxu0
        %v748 = vadd.f32 %v684, %v747
        %v749 = vpop.f32.mrf.mxu0
        %750 = vmatprep.mubr.bf16.mxu0 %v366
        %751 = vmatmul.mubr.bf16.gmra.mxu0 %v365
        %v752 = vpop.f32.mrf.mxu0
        %v753 = vadd.f32 %v684, %v752
        %v754 = vpop.f32.mrf.mxu0
        %v755 = vpop.f32.mrf.mxu0
        %v756 = vadd.f32 %v684, %v755
        %v757 = vpop.f32.mrf.mxu0
        %758 = vmatprep.mubr.bf16.mxu0 %v368
        %759 = vmatmul.mubr.bf16.gmra.mxu0 %v367
        %v760 = vpop.f32.mrf.mxu0
        %v761 = vadd.f32 %v684, %v760
        %v762 = vpop.f32.mrf.mxu0
        %v763 = vpop.f32.mrf.mxu0
        %v764 = vadd.f32 %v684, %v763
        %v765 = vpop.f32.mrf.mxu0
        %766 = vmatprep.mubr.bf16.mxu0 %v370
        %767 = vmatmul.mubr.bf16.gmra.mxu0 %v369
        %v768 = vpop.f32.mrf.mxu0
        %v769 = vadd.f32 %v684, %v768
        %v770 = vpop.f32.mrf.mxu0
        %v771 = vpop.f32.mrf.mxu0
        %v772 = vadd.f32 %v684, %v771
        %v773 = vpop.f32.mrf.mxu0
        %774 = vmatprep.mubr.bf16.mxu0 %v372
        %775 = vmatmul.mubr.bf16.gmra.mxu0 %v371
        %v776 = vpop.f32.mrf.mxu0
        %v777 = vadd.f32 %v684, %v776
        %v778 = vpop.f32.mrf.mxu0
        %v779 = vpop.f32.mrf.mxu0
        %v780 = vadd.f32 %v684, %v779
        %v781 = vpop.f32.mrf.mxu0
        %782 = vmatprep.mubr.bf16.mxu0 %v374
        %783 = vmatmul.mubr.bf16.gmra.mxu0 %v373
        %v784 = vpop.f32.mrf.mxu0
        %v785 = vadd.f32 %v684, %v784
        %v786 = vpop.f32.mrf.mxu0
        %v787 = vpop.f32.mrf.mxu0
        %v788 = vadd.f32 %v684, %v787
        %v789 = vpop.f32.mrf.mxu0
        %790 = vmatprep.mubr.bf16.mxu0 %v376
        %791 = vmatmul.mubr.bf16.gmra.mxu0 %v375
        %v792 = vpop.f32.mrf.mxu0
        %v793 = vadd.f32 %v684, %v792
        %v794 = vpop.f32.mrf.mxu0
        %v795 = vpop.f32.mrf.mxu0
        %v796 = vadd.f32 %v684, %v795
        %v797 = vpop.f32.mrf.mxu0
        %798 = vmatprep.mubr.bf16.mxu0 %v378
        %799 = vmatmul.mubr.bf16.gmra.mxu0 %v377
        %v800 = vpop.f32.mrf.mxu0
        %v801 = vadd.f32 %v684, %v800
        %v802 = vpop.f32.mrf.mxu0
        %v803 = vpop.f32.mrf.mxu0
        %v804 = vadd.f32 %v684, %v803
        %v805 = vpop.f32.mrf.mxu0
        %806 = vmatprep.mubr.bf16.mxu0 %v380
        %807 = vmatmul.mubr.bf16.gmra.mxu0 %v379
        %v808 = vpop.f32.mrf.mxu0
        %v809 = vadd.f32 %v684, %v808
        %v810 = vpop.f32.mrf.mxu0
        %v811 = vpop.f32.mrf.mxu0
        %v812 = vadd.f32 %v684, %v811
        %v813 = vpop.f32.mrf.mxu0
        %814 = vmatprep.mubr.bf16.mxu0 %v382
        %815 = vmatmul.mubr.bf16.gmra.mxu0 %v381
        %v816 = vpop.f32.mrf.mxu0
        %v817 = vadd.f32 %v684, %v816
        %v818 = vpop.f32.mrf.mxu0
        %v819 = vpop.f32.mrf.mxu0
        %v820 = vadd.f32 %v684, %v819
        %v821 = vpop.f32.mrf.mxu0
        %822 = vmatprep.mubr.bf16.mxu0 %v384
        %823 = vmatmul.mubr.bf16.gmra.mxu0 %v383
        %v824 = vpop.f32.mrf.mxu0
        %v825 = vadd.f32 %v684, %v824
        %v826 = vpop.f32.mrf.mxu0
        %v827 = vpop.f32.mrf.mxu0
        %v828 = vadd.f32 %v684, %v827
        %v829 = vpop.f32.mrf.mxu0
        %830 = vmatprep.mubr.bf16.mxu0 %v386
        %831 = vmatmul.mubr.bf16.gmra.mxu0 %v385
        %v832 = vpop.f32.mrf.mxu0
        %v833 = vadd.f32 %v684, %v832
        %v834 = vpop.f32.mrf.mxu0
        %v835 = vpop.f32.mrf.mxu0
        %v836 = vadd.f32 %v684, %v835
        %v837 = vpop.f32.mrf.mxu0
        %838 = vmatprep.mubr.bf16.mxu0 %v388
        %839 = vmatmul.mubr.bf16.gmra.mxu0 %v387
        %v840 = vpop.f32.mrf.mxu0
        %v841 = vadd.f32 %v684, %v840
        %v842 = vpop.f32.mrf.mxu0
        %v843 = vpop.f32.mrf.mxu0
        %v844 = vadd.f32 %v684, %v843
        %v845 = vpop.f32.mrf.mxu0
        %846 = vdwg.mxu0
        %v847 = vmax.f32 %v721, 0.0
        %v848 = vmax.f32 %v724, 0.0
        %v849 = vmax.f32 %v729, 0.0
        %v850 = vmax.f32 %v732, 0.0
        %v851 = vmax.f32 %v737, 0.0
        %v852 = vmax.f32 %v740, 0.0
        %v853 = vmax.f32 %v745, 0.0
        %v854 = vmax.f32 %v748, 0.0
        %v855 = vmax.f32 %v753, 0.0
        %v856 = vmax.f32 %v756, 0.0
        %v857 = vmax.f32 %v761, 0.0
        %v858 = vmax.f32 %v764, 0.0
        %v859 = vmax.f32 %v769, 0.0
        %v860 = vmax.f32 %v772, 0.0
        %v861 = vmax.f32 %v777, 0.0
        %v862 = vmax.f32 %v780, 0.0
        %v863 = vmax.f32 %v785, 0.0
        %v864 = vmax.f32 %v788, 0.0
        %v865 = vmax.f32 %v793, 0.0
        %v866 = vmax.f32 %v796, 0.0
        %v867 = vmax.f32 %v801, 0.0
        %v868 = vmax.f32 %v804, 0.0
        %v869 = vmax.f32 %v809, 0.0
        %v870 = vmax.f32 %v812, 0.0
        %v871 = vmax.f32 %v817, 0.0
        %v872 = vmax.f32 %v820, 0.0
        %v873 = vmax.f32 %v825, 0.0
        %v874 = vmax.f32 %v828, 0.0
        %v875 = vmax.f32 %v833, 0.0
        %v876 = vmax.f32 %v836, 0.0
        %v877 = vmax.f32 %v841, 0.0
        %v878 = vmax.f32 %v844, 0.0
        %v879 = vpack.c.bf16 %v848, %v847
        %v880 = vpack.c.bf16 %v850, %v849
        %v881 = vpack.c.bf16 %v852, %v851
        %v882 = vpack.c.bf16 %v854, %v853
        %v883 = vpack.c.bf16 %v856, %v855
        %v884 = vpack.c.bf16 %v858, %v857
        %v885 = vpack.c.bf16 %v860, %v859
        %v886 = vpack.c.bf16 %v862, %v861
        %v887 = vpack.c.bf16 %v864, %v863
        %v888 = vpack.c.bf16 %v866, %v865
        %v889 = vpack.c.bf16 %v868, %v867
        %v890 = vpack.c.bf16 %v870, %v869
        %v891 = vpack.c.bf16 %v872, %v871
        %v892 = vpack.c.bf16 %v874, %v873
        %v893 = vpack.c.bf16 %v876, %v875
        %v894 = vpack.c.bf16 %v878, %v877
        %v895 = vld [vmem:[%s4] sm:$0xf]
        %v896 = vld [vmem:[%s4 + $0x4] sm:$0xf]
        %v897 = vld [vmem:[%s4 + $0x8] sm:$0xf]
        %v898 = vld [vmem:[%s4 + $0xc] sm:$0xf]
        %v903 = vunpack.c.l.b16 %v895
        %v904 = vunpack.c.l.b16 %v896
        %v905 = vunpack.c.l.b16 %v897
        %v906 = vunpack.c.l.b16 %v898
        %v907 = vpack.c.b16 %v904, %v903
        %v908 = vpack.c.b16 %v906, %v905
        %v912 = vsel %vm453, %v879, 0
        %v915 = vsel %vm453, %v880, 0
        %v918 = vsel %vm453, %v881, 0
        %v921 = vsel %vm453, %v882, 0
        %v924 = vsel %vm453, %v883, 0
        %v927 = vsel %vm453, %v884, 0
        %v930 = vsel %vm453, %v885, 0
        %v933 = vsel %vm453, %v886, 0
        %v936 = vsel %vm453, %v887, 0
        %v939 = vsel %vm453, %v888, 0
        %v942 = vsel %vm453, %v889, 0
        %v945 = vsel %vm453, %v890, 0
        %v948 = vsel %vm453, %v891, 0
        %v951 = vsel %vm453, %v892, 0
        %v954 = vsel %vm453, %v893, 0
        %v957 = vsel %vm453, %v894, 0
        %959 = vmatprep.subr.bf16.mxu0 0
        %960 = vmatpush1.bf16.msra.mxu0 0
        %961 = vmatprep.subr.bf16.mxu0 0
        %962 = vmatpush1.bf16.msra.mxu0 0
        %963 = vmatprep.subr.bf16.mxu0 0
        %964 = vmatpush1.bf16.msra.mxu0 0
        %965 = vmatprep.subr.bf16.mxu0 0
        %966 = vmatpush1.bf16.msra.mxu0 0
        %967 = vmatprep.subr.bf16.mxu0 0
        %968 = vmatpush1.bf16.msra.mxu0 0
        %969 = vmatprep.subr.bf16.mxu0 0
        %970 = vmatpush1.bf16.msra.mxu0 0
        %971 = vmatprep.subr.bf16.mxu0 0
        %972 = vmatpush1.bf16.msra.mxu0 %v908
        %973 = vmatprep.subr.bf16.mxu0 0
        %974 = vmatpush1.bf16.msra.mxu0 %v907
        %975 = vmatprep.subr.bf16.mxu0 0
        %976 = vmatpush2.bf16.msra.mxu0 0
        %977 = vmatprep.subr.bf16.mxu0 0
        %978 = vmatpush2.bf16.msra.mxu0 0
        %979 = vmatprep.subr.bf16.mxu0 0
        %980 = vmatpush2.bf16.msra.mxu0 0
        %981 = vmatprep.subr.bf16.mxu0 0
        %982 = vmatpush2.bf16.msra.mxu0 0
        %983 = vmatprep.subr.bf16.mxu0 0
        %984 = vmatpush2.bf16.msra.mxu0 0
        %985 = vmatprep.subr.bf16.mxu0 0
        %986 = vmatpush2.bf16.msra.mxu0 0
        %987 = vmatprep.subr.bf16.mxu0 0
        %988 = vmatpush2.bf16.msra.mxu0 0
        %989 = vmatprep.subr.bf16.mxu0 0
        %990 = vmatpush2.bf16.msra.mxu0 0
        %991 = vmatprep.mubr.bf16.mxu0 0
        %992 = vmatmul.mubr.bf16.gmra.mxu0 %v912
        %v993 = vpop.f32.mrf.mxu0
        %v994 = vadd.f32 0.0, %v993
        %v995 = vpop.f32.mrf.mxu0
        %v996 = vpop.f32.mrf.mxu0
        %v997 = vadd.f32 0.0, %v996
        %v998 = vpop.f32.mrf.mxu0
        %999 = vmatprep.mubr.bf16.mxu0 0
        %1000 = vmatmul.mubr.bf16.gmra.mxu0 %v915
        %v1001 = vpop.f32.mrf.mxu0
        %v1002 = vadd.f32 0.0, %v1001
        %v1003 = vpop.f32.mrf.mxu0
        %v1004 = vpop.f32.mrf.mxu0
        %v1005 = vadd.f32 0.0, %v1004
        %v1006 = vpop.f32.mrf.mxu0
        %1007 = vmatprep.mubr.bf16.mxu0 0
        %1008 = vmatmul.mubr.bf16.gmra.mxu0 %v918
        %v1009 = vpop.f32.mrf.mxu0
        %v1010 = vadd.f32 0.0, %v1009
        %v1011 = vpop.f32.mrf.mxu0
        %v1012 = vpop.f32.mrf.mxu0
        %v1013 = vadd.f32 0.0, %v1012
        %v1014 = vpop.f32.mrf.mxu0
        %1015 = vmatprep.mubr.bf16.mxu0 0
        %1016 = vmatmul.mubr.bf16.gmra.mxu0 %v921
        %v1017 = vpop.f32.mrf.mxu0
        %v1018 = vadd.f32 0.0, %v1017
        %v1019 = vpop.f32.mrf.mxu0
        %v1020 = vpop.f32.mrf.mxu0
        %v1021 = vadd.f32 0.0, %v1020
        %v1022 = vpop.f32.mrf.mxu0
        %1023 = vmatprep.mubr.bf16.mxu0 0
        %1024 = vmatmul.mubr.bf16.gmra.mxu0 %v924
        %v1025 = vpop.f32.mrf.mxu0
        %v1026 = vadd.f32 0.0, %v1025
        %v1027 = vpop.f32.mrf.mxu0
        %v1028 = vpop.f32.mrf.mxu0
        %v1029 = vadd.f32 0.0, %v1028
        %v1030 = vpop.f32.mrf.mxu0
        %1031 = vmatprep.mubr.bf16.mxu0 0
        %1032 = vmatmul.mubr.bf16.gmra.mxu0 %v927
        %v1033 = vpop.f32.mrf.mxu0
        %v1034 = vadd.f32 0.0, %v1033
        %v1035 = vpop.f32.mrf.mxu0
        %v1036 = vpop.f32.mrf.mxu0
        %v1037 = vadd.f32 0.0, %v1036
        %v1038 = vpop.f32.mrf.mxu0
        %1039 = vmatprep.mubr.bf16.mxu0 0
        %1040 = vmatmul.mubr.bf16.gmra.mxu0 %v930
        %v1041 = vpop.f32.mrf.mxu0
        %v1042 = vadd.f32 0.0, %v1041
        %v1043 = vpop.f32.mrf.mxu0
        %v1044 = vpop.f32.mrf.mxu0
        %v1045 = vadd.f32 0.0, %v1044
        %v1046 = vpop.f32.mrf.mxu0
        %1047 = vmatprep.mubr.bf16.mxu0 0
        %1048 = vmatmul.mubr.bf16.gmra.mxu0 %v933
        %v1049 = vpop.f32.mrf.mxu0
        %v1050 = vadd.f32 0.0, %v1049
        %v1051 = vpop.f32.mrf.mxu0
        %v1052 = vpop.f32.mrf.mxu0
        %v1053 = vadd.f32 0.0, %v1052
        %v1054 = vpop.f32.mrf.mxu0
        %1055 = vmatprep.mubr.bf16.mxu0 0
        %1056 = vmatmul.mubr.bf16.gmra.mxu0 %v936
        %v1057 = vpop.f32.mrf.mxu0
        %v1058 = vadd.f32 0.0, %v1057
        %v1059 = vpop.f32.mrf.mxu0
        %v1060 = vpop.f32.mrf.mxu0
        %v1061 = vadd.f32 0.0, %v1060
        %v1062 = vpop.f32.mrf.mxu0
        %1063 = vmatprep.mubr.bf16.mxu0 0
        %1064 = vmatmul.mubr.bf16.gmra.mxu0 %v939
        %v1065 = vpop.f32.mrf.mxu0
        %v1066 = vadd.f32 0.0, %v1065
        %v1067 = vpop.f32.mrf.mxu0
        %v1068 = vpop.f32.mrf.mxu0
        %v1069 = vadd.f32 0.0, %v1068
        %v1070 = vpop.f32.mrf.mxu0
        %1071 = vmatprep.mubr.bf16.mxu0 0
        %1072 = vmatmul.mubr.bf16.gmra.mxu0 %v942
        %v1073 = vpop.f32.mrf.mxu0
        %v1074 = vadd.f32 0.0, %v1073
        %v1075 = vpop.f32.mrf.mxu0
        %v1076 = vpop.f32.mrf.mxu0
        %v1077 = vadd.f32 0.0, %v1076
        %v1078 = vpop.f32.mrf.mxu0
        %1079 = vmatprep.mubr.bf16.mxu0 0
        %1080 = vmatmul.mubr.bf16.gmra.mxu0 %v945
        %v1081 = vpop.f32.mrf.mxu0
        %v1082 = vadd.f32 0.0, %v1081
        %v1083 = vpop.f32.mrf.mxu0
        %v1084 = vpop.f32.mrf.mxu0
        %v1085 = vadd.f32 0.0, %v1084
        %v1086 = vpop.f32.mrf.mxu0
        %1087 = vmatprep.mubr.bf16.mxu0 0
        %1088 = vmatmul.mubr.bf16.gmra.mxu0 %v948
        %v1089 = vpop.f32.mrf.mxu0
        %v1090 = vadd.f32 0.0, %v1089
        %v1091 = vpop.f32.mrf.mxu0
        %v1092 = vpop.f32.mrf.mxu0
        %v1093 = vadd.f32 0.0, %v1092
        %v1094 = vpop.f32.mrf.mxu0
        %1095 = vmatprep.mubr.bf16.mxu0 0
        %1096 = vmatmul.mubr.bf16.gmra.mxu0 %v951
        %v1097 = vpop.f32.mrf.mxu0
        %v1098 = vadd.f32 0.0, %v1097
        %v1099 = vpop.f32.mrf.mxu0
        %v1100 = vpop.f32.mrf.mxu0
        %v1101 = vadd.f32 0.0, %v1100
        %v1102 = vpop.f32.mrf.mxu0
        %1103 = vmatprep.mubr.bf16.mxu0 0
        %1104 = vmatmul.mubr.bf16.gmra.mxu0 %v954
        %v1105 = vpop.f32.mrf.mxu0
        %v1106 = vadd.f32 0.0, %v1105
        %v1107 = vpop.f32.mrf.mxu0
        %v1108 = vpop.f32.mrf.mxu0
        %v1109 = vadd.f32 0.0, %v1108
        %v1110 = vpop.f32.mrf.mxu0
        %1111 = vmatprep.mubr.bf16.mxu0 0
        %1112 = vmatmul.mubr.bf16.gmra.mxu0 %v957
        %v1113 = vpop.f32.mrf.mxu0
        %v1114 = vadd.f32 0.0, %v1113
        %v1115 = vpop.f32.mrf.mxu0
        %v1116 = vpop.f32.mrf.mxu0
        %v1117 = vadd.f32 0.0, %v1116
        %v1118 = vpop.f32.mrf.mxu0
        %1119 = vdwg.mxu0
        %v1120 = vpack.c.bf16 %v997, %v994
        %v1121 = vpack.c.bf16 %v1005, %v1002
        %v1122 = vpack.c.bf16 %v1013, %v1010
        %v1123 = vpack.c.bf16 %v1021, %v1018
        %v1124 = vpack.c.bf16 %v1029, %v1026
        %v1125 = vpack.c.bf16 %v1037, %v1034
        %v1126 = vpack.c.bf16 %v1045, %v1042
        %v1127 = vpack.c.bf16 %v1053, %v1050
        %v1128 = vpack.c.bf16 %v1061, %v1058
        %v1129 = vpack.c.bf16 %v1069, %v1066
        %v1130 = vpack.c.bf16 %v1077, %v1074
        %v1131 = vpack.c.bf16 %v1085, %v1082
        %v1132 = vpack.c.bf16 %v1093, %v1090
        %v1133 = vpack.c.bf16 %v1101, %v1098
        %v1134 = vpack.c.bf16 %v1109, %v1106
        %v1135 = vpack.c.bf16 %v1117, %v1114
        %v1136 = vld [vmem:[%s5] sm:$0x1]
        %v1138 = vlaneseq
        %v1139 = vshrl.u32 %v1138, 7
        %v1140 = vsub.s32 0, %v1139
        %v1141 = vrot.slane %v1136, %v1140
        %1143 = vmatprep.subr.bf16.mxu0 0
        %1144 = vmatpush1.bf16.msra.mxu0 %v1127
        %1145 = vmatprep.subr.bf16.mxu0 0
        %1146 = vmatpush1.bf16.msra.mxu0 %v1126
        %1147 = vmatprep.subr.bf16.mxu0 0
        %1148 = vmatpush1.bf16.msra.mxu0 %v1125
        %1149 = vmatprep.subr.bf16.mxu0 0
        %1150 = vmatpush1.bf16.msra.mxu0 %v1124
        %1151 = vmatprep.subr.bf16.mxu0 0
        %1152 = vmatpush1.bf16.msra.mxu0 %v1123
        %1153 = vmatprep.subr.bf16.mxu0 0
        %1154 = vmatpush1.bf16.msra.mxu0 %v1122
        %1155 = vmatprep.subr.bf16.mxu0 0
        %1156 = vmatpush1.bf16.msra.mxu0 %v1121
        %1157 = vmatprep.subr.bf16.mxu0 0
        %1158 = vmatpush1.bf16.msra.mxu0 %v1120
        %1159 = vmatprep.subr.bf16.mxu0 0
        %1160 = vmatpush2.bf16.msra.mxu0 %v1135
        %1161 = vmatprep.subr.bf16.mxu0 0
        %1162 = vmatpush2.bf16.msra.mxu0 %v1134
        %1163 = vmatprep.subr.bf16.mxu0 0
        %1164 = vmatpush2.bf16.msra.mxu0 %v1133
        %1165 = vmatprep.subr.bf16.mxu0 0
        %1166 = vmatpush2.bf16.msra.mxu0 %v1132
        %1167 = vmatprep.subr.bf16.mxu0 0
        %1168 = vmatpush2.bf16.msra.mxu0 %v1131
        %1169 = vmatprep.subr.bf16.mxu0 0
        %1170 = vmatpush2.bf16.msra.mxu0 %v1130
        %1171 = vmatprep.subr.bf16.mxu0 0
        %1172 = vmatpush2.bf16.msra.mxu0 %v1129
        %1173 = vmatprep.subr.bf16.mxu0 0
        %1174 = vmatpush2.bf16.msra.mxu0 %v1128
        %1175 = vmatprep.mubr.bf16.mxu0 %v358
        %1176 = vmatmul.mubr.bf16.gmra.mxu0 %v357
        %v1177 = vpop.f32.mrf.mxu0
        %v1178 = vadd.f32 %v1141, %v1177
        %v1179 = vpop.f32.mrf.mxu0
        %v1180 = vpop.f32.mrf.mxu0
        %v1181 = vadd.f32 %v1141, %v1180
        %v1182 = vpop.f32.mrf.mxu0
        %1183 = vmatprep.mubr.bf16.mxu0 %v360
        %1184 = vmatmul.mubr.bf16.gmra.mxu0 %v359
        %v1185 = vpop.f32.mrf.mxu0
        %v1186 = vadd.f32 %v1141, %v1185
        %v1187 = vpop.f32.mrf.mxu0
        %v1188 = vpop.f32.mrf.mxu0
        %v1189 = vadd.f32 %v1141, %v1188
        %v1190 = vpop.f32.mrf.mxu0
        %1191 = vmatprep.mubr.bf16.mxu0 %v362
        %1192 = vmatmul.mubr.bf16.gmra.mxu0 %v361
        %v1193 = vpop.f32.mrf.mxu0
        %v1194 = vadd.f32 %v1141, %v1193
        %v1195 = vpop.f32.mrf.mxu0
        %v1196 = vpop.f32.mrf.mxu0
        %v1197 = vadd.f32 %v1141, %v1196
        %v1198 = vpop.f32.mrf.mxu0
        %1199 = vmatprep.mubr.bf16.mxu0 %v364
        %1200 = vmatmul.mubr.bf16.gmra.mxu0 %v363
        %v1201 = vpop.f32.mrf.mxu0
        %v1202 = vadd.f32 %v1141, %v1201
        %v1203 = vpop.f32.mrf.mxu0
        %v1204 = vpop.f32.mrf.mxu0
        %v1205 = vadd.f32 %v1141, %v1204
        %v1206 = vpop.f32.mrf.mxu0
        %1207 = vmatprep.mubr.bf16.mxu0 %v366
        %1208 = vmatmul.mubr.bf16.gmra.mxu0 %v365
        %v1209 = vpop.f32.mrf.mxu0
        %v1210 = vadd.f32 %v1141, %v1209
        %v1211 = vpop.f32.mrf.mxu0
        %v1212 = vpop.f32.mrf.mxu0
        %v1213 = vadd.f32 %v1141, %v1212
        %v1214 = vpop.f32.mrf.mxu0
        %1215 = vmatprep.mubr.bf16.mxu0 %v368
        %1216 = vmatmul.mubr.bf16.gmra.mxu0 %v367
        %v1217 = vpop.f32.mrf.mxu0
        %v1218 = vadd.f32 %v1141, %v1217
        %v1219 = vpop.f32.mrf.mxu0
        %v1220 = vpop.f32.mrf.mxu0
        %v1221 = vadd.f32 %v1141, %v1220
        %v1222 = vpop.f32.mrf.mxu0
        %1223 = vmatprep.mubr.bf16.mxu0 %v370
        %1224 = vmatmul.mubr.bf16.gmra.mxu0 %v369
        %v1225 = vpop.f32.mrf.mxu0
        %v1226 = vadd.f32 %v1141, %v1225
        %v1227 = vpop.f32.mrf.mxu0
        %v1228 = vpop.f32.mrf.mxu0
        %v1229 = vadd.f32 %v1141, %v1228
        %v1230 = vpop.f32.mrf.mxu0
        %1231 = vmatprep.mubr.bf16.mxu0 %v372
        %1232 = vmatmul.mubr.bf16.gmra.mxu0 %v371
        %v1233 = vpop.f32.mrf.mxu0
        %v1234 = vadd.f32 %v1141, %v1233
        %v1235 = vpop.f32.mrf.mxu0
        %v1236 = vpop.f32.mrf.mxu0
        %v1237 = vadd.f32 %v1141, %v1236
        %v1238 = vpop.f32.mrf.mxu0
        %1239 = vmatprep.mubr.bf16.mxu0 %v374
        %1240 = vmatmul.mubr.bf16.gmra.mxu0 %v373
        %v1241 = vpop.f32.mrf.mxu0
        %v1242 = vadd.f32 %v1141, %v1241
        %v1243 = vpop.f32.mrf.mxu0
        %v1244 = vpop.f32.mrf.mxu0
        %v1245 = vadd.f32 %v1141, %v1244
        %v1246 = vpop.f32.mrf.mxu0
        %1247 = vmatprep.mubr.bf16.mxu0 %v376
        %1248 = vmatmul.mubr.bf16.gmra.mxu0 %v375
        %v1249 = vpop.f32.mrf.mxu0
        %v1250 = vadd.f32 %v1141, %v1249
        %v1251 = vpop.f32.mrf.mxu0
        %v1252 = vpop.f32.mrf.mxu0
        %v1253 = vadd.f32 %v1141, %v1252
        %v1254 = vpop.f32.mrf.mxu0
        %1255 = vmatprep.mubr.bf16.mxu0 %v378
        %1256 = vmatmul.mubr.bf16.gmra.mxu0 %v377
        %v1257 = vpop.f32.mrf.mxu0
        %v1258 = vadd.f32 %v1141, %v1257
        %v1259 = vpop.f32.mrf.mxu0
        %v1260 = vpop.f32.mrf.mxu0
        %v1261 = vadd.f32 %v1141, %v1260
        %v1262 = vpop.f32.mrf.mxu0
        %1263 = vmatprep.mubr.bf16.mxu0 %v380
        %1264 = vmatmul.mubr.bf16.gmra.mxu0 %v379
        %v1265 = vpop.f32.mrf.mxu0
        %v1266 = vadd.f32 %v1141, %v1265
        %v1267 = vpop.f32.mrf.mxu0
        %v1268 = vpop.f32.mrf.mxu0
        %v1269 = vadd.f32 %v1141, %v1268
        %v1270 = vpop.f32.mrf.mxu0
        %1271 = vmatprep.mubr.bf16.mxu0 %v382
        %1272 = vmatmul.mubr.bf16.gmra.mxu0 %v381
        %v1273 = vpop.f32.mrf.mxu0
        %v1274 = vadd.f32 %v1141, %v1273
        %v1275 = vpop.f32.mrf.mxu0
        %v1276 = vpop.f32.mrf.mxu0
        %v1277 = vadd.f32 %v1141, %v1276
        %v1278 = vpop.f32.mrf.mxu0
        %1279 = vmatprep.mubr.bf16.mxu0 %v384
        %1280 = vmatmul.mubr.bf16.gmra.mxu0 %v383
        %v1281 = vpop.f32.mrf.mxu0
        %v1282 = vadd.f32 %v1141, %v1281
        %v1283 = vpop.f32.mrf.mxu0
        %v1284 = vpop.f32.mrf.mxu0
        %v1285 = vadd.f32 %v1141, %v1284
        %v1286 = vpop.f32.mrf.mxu0
        %1287 = vmatprep.mubr.bf16.mxu0 %v386
        %1288 = vmatmul.mubr.bf16.gmra.mxu0 %v385
        %v1289 = vpop.f32.mrf.mxu0
        %v1290 = vadd.f32 %v1141, %v1289
        %v1291 = vpop.f32.mrf.mxu0
        %v1292 = vpop.f32.mrf.mxu0
        %v1293 = vadd.f32 %v1141, %v1292
        %v1294 = vpop.f32.mrf.mxu0
        %1295 = vmatprep.mubr.bf16.mxu0 %v388
        %1296 = vmatmul.mubr.bf16.gmra.mxu0 %v387
        %v1297 = vpop.f32.mrf.mxu0
        %v1298 = vadd.f32 %v1141, %v1297
        %v1299 = vpop.f32.mrf.mxu0
        %v1300 = vpop.f32.mrf.mxu0
        %v1301 = vadd.f32 %v1141, %v1300
        %v1302 = vpop.f32.mrf.mxu0
        %1303 = vdwg.mxu0
        %v1304 = vmax.f32 %v1178, 0.0
        %v1305 = vmax.f32 %v1181, 0.0
        %v1306 = vmax.f32 %v1186, 0.0
        %v1307 = vmax.f32 %v1189, 0.0
        %v1308 = vmax.f32 %v1194, 0.0
        %v1309 = vmax.f32 %v1197, 0.0
        %v1310 = vmax.f32 %v1202, 0.0
        %v1311 = vmax.f32 %v1205, 0.0
        %v1312 = vmax.f32 %v1210, 0.0
        %v1313 = vmax.f32 %v1213, 0.0
        %v1314 = vmax.f32 %v1218, 0.0
        %v1315 = vmax.f32 %v1221, 0.0
        %v1316 = vmax.f32 %v1226, 0.0
        %v1317 = vmax.f32 %v1229, 0.0
        %v1318 = vmax.f32 %v1234, 0.0
        %v1319 = vmax.f32 %v1237, 0.0
        %v1320 = vmax.f32 %v1242, 0.0
        %v1321 = vmax.f32 %v1245, 0.0
        %v1322 = vmax.f32 %v1250, 0.0
        %v1323 = vmax.f32 %v1253, 0.0
        %v1324 = vmax.f32 %v1258, 0.0
        %v1325 = vmax.f32 %v1261, 0.0
        %v1326 = vmax.f32 %v1266, 0.0
        %v1327 = vmax.f32 %v1269, 0.0
        %v1328 = vmax.f32 %v1274, 0.0
        %v1329 = vmax.f32 %v1277, 0.0
        %v1330 = vmax.f32 %v1282, 0.0
        %v1331 = vmax.f32 %v1285, 0.0
        %v1332 = vmax.f32 %v1290, 0.0
        %v1333 = vmax.f32 %v1293, 0.0
        %v1334 = vmax.f32 %v1298, 0.0
        %v1335 = vmax.f32 %v1301, 0.0
        %1336 = vst.msk [vmem:[%s291] sm:$0xff] %vm453, %v1304
        %1337 = vst.msk [vmem:[%s291 + $0x8] sm:$0xff] %vm453, %v1305
        %1338 = vst.msk [vmem:[%s291 + $0x10] sm:$0xff] %vm453, %v1306
        %1339 = vst.msk [vmem:[%s291 + $0x18] sm:$0xff] %vm453, %v1307
        %1340 = vst.msk [vmem:[%s291 + $0x20] sm:$0xff] %vm453, %v1308
        %1341 = vst.msk [vmem:[%s291 + $0x28] sm:$0xff] %vm453, %v1309
        %1342 = vst.msk [vmem:[%s291 + $0x30] sm:$0xff] %vm453, %v1310
        %1343 = vst.msk [vmem:[%s291 + $0x38] sm:$0xff] %vm453, %v1311
        %1344 = vst.msk [vmem:[%s291 + $0x40] sm:$0xff] %vm453, %v1312
        %1345 = vst.msk [vmem:[%s291 + $0x48] sm:$0xff] %vm453, %v1313
        %1346 = vst.msk [vmem:[%s291 + $0x50] sm:$0xff] %vm453, %v1314
        %1347 = vst.msk [vmem:[%s291 + $0x58] sm:$0xff] %vm453, %v1315
        %1348 = vst.msk [vmem:[%s291 + $0x60] sm:$0xff] %vm453, %v1316
        %1349 = vst.msk [vmem:[%s291 + $0x68] sm:$0xff] %vm453, %v1317
        %1350 = vst.msk [vmem:[%s291 + $0x70] sm:$0xff] %vm453, %v1318
        %1351 = vst.msk [vmem:[%s291 + $0x78] sm:$0xff] %vm453, %v1319
        %1352 = vst.msk [vmem:[%s291 + $0x80] sm:$0xff] %vm453, %v1320
        %1353 = vst.msk [vmem:[%s291 + $0x88] sm:$0xff] %vm453, %v1321
        %1354 = vst.msk [vmem:[%s291 + $0x90] sm:$0xff] %vm453, %v1322
        %1355 = vst.msk [vmem:[%s291 + $0x98] sm:$0xff] %vm453, %v1323
        %1356 = vst.msk [vmem:[%s291 + $0xa0] sm:$0xff] %vm453, %v1324
        %1357 = vst.msk [vmem:[%s291 + $0xa8] sm:$0xff] %vm453, %v1325
        %1358 = vst.msk [vmem:[%s291 + $0xb0] sm:$0xff] %vm453, %v1326
        %1359 = vst.msk [vmem:[%s291 + $0xb8] sm:$0xff] %vm453, %v1327
        %1360 = vst.msk [vmem:[%s291 + $0xc0] sm:$0xff] %vm453, %v1328
        %1361 = vst.msk [vmem:[%s291 + $0xc8] sm:$0xff] %vm453, %v1329
        %1362 = vst.msk [vmem:[%s291 + $0xd0] sm:$0xff] %vm453, %v1330
        %1363 = vst.msk [vmem:[%s291 + $0xd8] sm:$0xff] %vm453, %v1331
        %1364 = vst.msk [vmem:[%s291 + $0xe0] sm:$0xff] %vm453, %v1332
        %1365 = vst.msk [vmem:[%s291 + $0xe8] sm:$0xff] %vm453, %v1333
        %1366 = vst.msk [vmem:[%s291 + $0xf0] sm:$0xff] %vm453, %v1334
        %1367 = vst.msk [vmem:[%s291 + $0xf8] sm:$0xff] %vm453, %v1335
        %p1368 = scmp.lt.s32.totalorder %s20, 1
        %s1369 = scalar_select %p1368, %s20, 1
        %s1370 = smul.addr %s1369, 32
        %s1371 = smul.addr %s1370, 8
        %s1372 = scalar_lea.vmem %s6, %s1371
        // Predicated region
        $region49: #{combine_flexible_gnn.1} parent=43 // pred_check
          %p1373 = pneg %p174
        $region50: #{combine_flexible_gnn.1} parent=43 // pred_check_branch
          %1375 = sbr.rel (%p1373) target = $region52
        $region51: #{combine_flexible_gnn.1} parent=43 // pred_region
          _
        $region52: #{combine_flexible_gnn.1} parent=43 // pred_fallthru
          _
      $region44: #{combine_flexible_gnn.1} parent=5 // pred_fallthru
        _
      %p1376 = scmp.le.s32.totalorder 2, %s15
      // Predicated region
      $region53: #{combine_flexible_gnn.1} parent=5 // pred_check
        %p1377 = pneg %p1376
      $region54: #{combine_flexible_gnn.1} parent=5 // pred_check_branch
        %1379 = sbr.rel (%p1377) target = $region56
      $region55: #{combine_flexible_gnn.1} parent=5 // pred_region
        %s1380 = ssub.s32 %s15, 2
        // Predicated region
        $region57: #{combine_flexible_gnn.1} parent=55 // pred_check
          %p1381 = pneg %p180
        $region58: #{combine_flexible_gnn.1} parent=55 // pred_check_branch
          %1383 = sbr.rel (%p1381) target = $region60
        $region59: #{combine_flexible_gnn.1} parent=55 // pred_region
          %p1384 = scmp.lt.s32.totalorder %s21, 1
          %s1385 = scalar_select %p1384, %s21, 1
          %s1386 = smul.addr %s1385, 32
          %s1387 = smul.addr %s1386, 8
          %s1388 = scalar_lea.vmem %s6, %s1387
        $region60: #{combine_flexible_gnn.1} parent=55 // pred_fallthru
          _
      $region56: #{combine_flexible_gnn.1} parent=5 // pred_fallthru
        _
    $region6: #{combine_flexible_gnn.1} parent=1 // loop_footer
      %s19 = sadd.s32 1, %s15
    $region7: #{combine_flexible_gnn.1} parent=1 // loop_footer_branch
      %14 = sbr.rel target = $region3
    $region8: #{combine_flexible_gnn.1} parent=1 // loop_exit
      _
    %1389 = vsyncpa [#allocation3], 1
    %s1390 = scalar_lea.sflag [#allocation3], 1
    %1391 = vsyncpa %s1390, 1

</llo_original>
